<compile_context>
chip_gen: v7x
topology: tpu7x:2x2x1
jax: 0.10.0
libtpu: 0.0.40
codegen_flags: <defaults>
</compile_context>

<pallas_src>
import jax
import jax.numpy as jnp
from jax import lax
from jax.experimental import pallas as pl
from jax.experimental.pallas import tpu as pltpu


# --------------------------------------------------------------------------
# Generation-aware VMEM sizing
# --------------------------------------------------------------------------
def _vmem_budgets():
    """Returns (vmem_limit_bytes, residency_budget_bytes)."""
    try:
        cap = int(pltpu.get_tpu_info().vmem_capacity_bytes)
    except Exception:
        cap = 64 * 1024 * 1024          # conservative: v7x per-TensorCore VMEM
    vmem_limit = min(cap * 3 // 4, 112 * 1024 * 1024)   # 96 MiB on v5e/v6e, 48 MiB on v7x
    budget = vmem_limit * 3 // 5                         # headroom for compiler temps
    return int(vmem_limit), int(budget)


def _pick_row_tile(oh, n, per_row_bytes, fixed_bytes, budget_bytes):
    """Largest row-tile whose resident bytes fit the budget (no divisor req)."""
    avail = max(budget_bytes - fixed_bytes, per_row_bytes)
    t = int(max(1, min(oh, avail // max(per_row_bytes, 1))))
    if n == 1 and oh >= 2:
        # >= 2 row tiles so both TensorCores of a v7x chip get work.
        t = min(t, (oh + 1) // 2)
    return t


# --------------------------------------------------------------------------
# with_conv=True path:  x -> pad (right/bottom by 1) -> Conv2d(C, C, k=3, s=2)
# --------------------------------------------------------------------------
def _conv_down_kernel(x_ref, xh_ref, w2_ref, w1_ref, b_ref, o_ref):
    # x_ref : (1, t_oh, 2, wp, 2*C)   phase rows [j*t_oh, j*t_oh + t_oh)
    # xh_ref: (1, 1, 1, wp, 2*C)      halo: phase-0 row at (j+1)*t_oh
    # w2_ref: (3, 2*Cin, Cout)        kw=0 / kw=1 taps stacked along Cin
    # w1_ref: (3, Cin, Cout)          kw=2 tap
    # b_ref : (1, Cout)
    # o_ref : (1, t_oh, ow, Cout)
    _, t_oh, ow, c = o_ref.shape
    m = t_oh * ow

    # kh = 0 (phase-0 rows) and kh = 1 (phase-1 rows): fully inside the tile.
    rows0 = x_ref[0, :, 0]                              # (t_oh, wp, 2*C)
    rows1 = x_ref[0, :, 1]
    acc = jnp.dot(rows0[:, :ow, :].reshape(m, 2 * c), w2_ref[0],
                  preferred_element_type=jnp.float32)
    acc = acc + b_ref[...].astype(jnp.float32)          # bias folded in here
    acc = acc + jnp.dot(rows0[:, 1:1 + ow, :c].reshape(m, c), w1_ref[0],
                        preferred_element_type=jnp.float32)
    acc = acc + jnp.dot(rows1[:, :ow, :].reshape(m, 2 * c), w2_ref[1],
                        preferred_element_type=jnp.float32)
    acc = acc + jnp.dot(rows1[:, 1:1 + ow, :c].reshape(m, c), w1_ref[1],
                        preferred_element_type=jnp.float32)
    acc = acc.reshape(t_oh, ow, c)

    # kh = 2: phase-0 rows shifted down by one output row.
    # Split into tile-body rows + the single halo row (no input concatenate);
    # results are stored into disjoint slices of the output block.
    halo = xh_ref[0, 0, 0]                              # (wp, 2*C)
    khalo = jnp.dot(halo[:ow, :], w2_ref[2], preferred_element_type=jnp.float32)
    khalo = khalo + jnp.dot(halo[1:1 + ow, :c], w1_ref[2],
                            preferred_element_type=jnp.float32)
    if t_oh > 1:
        body = x_ref[0, 1:, 0]                          # (t_oh-1, wp, 2*C)
        mb = (t_oh - 1) * ow
        kbody = jnp.dot(body[:, :ow, :].reshape(mb, 2 * c), w2_ref[2],
                        preferred_element_type=jnp.float32)
        kbody = kbody + jnp.dot(body[:, 1:1 + ow, :c].reshape(mb, c), w1_ref[2],
                                preferred_element_type=jnp.float32)
        o_ref[0, :t_oh - 1] = (acc[:t_oh - 1]
                               + kbody.reshape(t_oh - 1, ow, c)).astype(o_ref.dtype)
    o_ref[0, t_oh - 1:] = (acc[t_oh - 1:]
                           + khalo.reshape(1, ow, c)).astype(o_ref.dtype)


# --------------------------------------------------------------------------
# with_conv=False path: 2x2 average pool, stride 2
# --------------------------------------------------------------------------
def _avgpool_kernel(x_ref, o_ref):
    # x_ref: (1, t_oh, 2, ow, 2*C);  o_ref: (1, t_oh, ow, C)
    c = o_ref.shape[-1]
    r0 = x_ref[0, :, 0]                     # (t_oh, ow, 2*C)  row phase 0
    r1 = x_ref[0, :, 1]                     # row phase 1
    s = (r0[..., :c].astype(jnp.float32) + r0[..., c:].astype(jnp.float32)
         + r1[..., :c].astype(jnp.float32) + r1[..., c:].astype(jnp.float32))
    o_ref[...] = (s * 0.25)[None].astype(o_ref.dtype)


# --------------------------------------------------------------------------
# Wrapper (plain-JAX glue: layout transform, padding, free reshapes)
# --------------------------------------------------------------------------
def downsample(x_nchw, params, with_conv):
    n, c, h, w = x_nchw.shape
    x = jnp.transpose(x_nchw, (0, 2, 3, 1))            # NCHW -> NHWC
    itemsize = jnp.dtype(x.dtype).itemsize
    vmem_limit, budget = _vmem_budgets()

    if with_conv:
        oh = (h - 2) // 2 + 1                           # = ((h+1) - 3)//2 + 1
        ow = (w - 2) // 2 + 1
        wp = ow + 1

        # --- generation-aware row tiling (ragged tail via oh padding) ------
        in_row = 2 * wp * 2 * c * itemsize              # one tile-row of input block
        out_row = ow * c * itemsize
        per_row = (2 * in_row            # double-buffered input block
                   + 2 * out_row         # double-buffered output block
                   + ow * c * 4          # f32 accumulator
                   + ow * 2 * c * itemsize + ow * c * itemsize   # patch temps
                   + 2 * ow * c * 4)     # dot-result temps
        fixed = (2 * wp * 2 * c * itemsize * 2                          # halo (x2 buf)
                 + (3 * 2 * c * c + 3 * c * c + c) * itemsize * 2)      # weights+bias
        t_oh = _pick_row_tile(oh, n, per_row, fixed, budget)
        grid_rows = -(-oh // t_oh)
        oh_pad = grid_rows * t_oh
        hp = oh_pad + 1
        # Halo index (j+1)*t_oh relies on exactly one extra padded phase row.
        assert hp == oh_pad + 1

        # Pad so padded extents are exactly 2*hp, 2*wp; extra zero rows/cols
        # beyond the F.pad row/col only feed discarded (>= oh) output rows.
        xp = jnp.pad(x, ((0, 0), (0, 2 * hp - h), (0, 2 * wp - w), (0, 0)))
        # Free reshape (contiguous splits/merges, no HBM transpose):
        # padded row = 2*pr + ph, padded col = 2*pc + pw (pw packed into lanes)
        xr = xp.reshape(n, hp, 2, wp, 2 * c)

        w_hwio = jnp.transpose(params["weight"], (2, 3, 1, 0))   # OIHW -> HWIO
        w2 = jnp.concatenate([w_hwio[:, 0], w_hwio[:, 1]], axis=1)  # (3, 2C, C)
        w1 = w_hwio[:, 2]                                           # (3, C, C)
        b2d = params["bias"].reshape(1, c)

        flops = 2 * n * oh_pad * ow * 9 * c * c
        bytes_accessed = (xr.size + n * oh_pad * ow * c
                          + w2.size + w1.size + c) * itemsize

        out = pl.pallas_call(
            _conv_down_kernel,
            out_shape=jax.ShapeDtypeStruct((n, oh_pad, ow, c), x.dtype),
            grid=(n, grid_rows),
            in_specs=[
                pl.BlockSpec((1, t_oh, 2, wp, 2 * c),
                             lambda b, j: (b, j, 0, 0, 0)),
                # Halo: phase-0 row only (phase-1 is never read by kh=2).
                pl.BlockSpec((1, 1, 1, wp, 2 * c),
                             lambda b, j: (b, (j + 1) * t_oh, 0, 0, 0)),
                pl.BlockSpec((3, 2 * c, c), lambda b, j: (0, 0, 0)),
                pl.BlockSpec((3, c, c), lambda b, j: (0, 0, 0)),
                pl.BlockSpec((1, c), lambda b, j: (0, 0)),
            ],
            out_specs=pl.BlockSpec((1, t_oh, ow, c),
                                   lambda b, j: (b, j, 0, 0)),
            compiler_params=pltpu.CompilerParams(
                dimension_semantics=("parallel", "parallel"),
                vmem_limit_bytes=vmem_limit),
            cost_estimate=pl.CostEstimate(
                flops=flops, transcendentals=0, bytes_accessed=bytes_accessed),
        )(xr, xr, w2, w1, b2d)
        out = out[:, :oh]
    else:
        oh, ow = h // 2, w // 2                         # floor, like avg_pool2d
        per_row = (2 * (2 * ow * 2 * c * itemsize)      # double-buffered input
                   + 2 * ow * c * itemsize              # double-buffered output
                   + 3 * ow * c * 4)                    # f32 temps
        t_oh = _pick_row_tile(oh, n, per_row, 0, budget)
        grid_rows = -(-oh // t_oh)
        oh_pad = grid_rows * t_oh

        xe = x[:, :2 * oh, :2 * ow, :]
        if oh_pad > oh:
            xe = jnp.pad(xe, ((0, 0), (0, 2 * (oh_pad - oh)), (0, 0), (0, 0)))
        xr = xe.reshape(n, oh_pad, 2, ow, 2 * c)        # free reshape

        out = pl.pallas_call(
            _avgpool_kernel,
            out_shape=jax.ShapeDtypeStruct((n, oh_pad, ow, c), x.dtype),
            grid=(n, grid_rows),
            in_specs=[pl.BlockSpec((1, t_oh, 2, ow, 2 * c),
                                   lambda b, j: (b, j, 0, 0, 0))],
            out_specs=pl.BlockSpec((1, t_oh, ow, c),
                                   lambda b, j: (b, j, 0, 0)),
            compiler_params=pltpu.CompilerParams(
                dimension_semantics=("parallel", "parallel"),
                vmem_limit_bytes=vmem_limit),
        )(xr)
        out = out[:, :oh]

    return jnp.transpose(out, (0, 3, 1, 2))             # NHWC -> NCHW


# --------------------------------------------------------------------------
# Pure-JAX references (correctness check only)
# --------------------------------------------------------------------------
def _ref_conv(x_nchw, params):
    xp = jnp.pad(x_nchw, ((0, 0), (0, 0), (0, 1), (0, 1)))      # pad=(0,1,0,1)
    y = lax.conv_general_dilated(
        xp, params["weight"], window_strides=(2, 2), padding="VALID",
        dimension_numbers=("NCHW", "OIHW", "NCHW"))
    return y + params["bias"][None, :, None, None]


def _ref_avgpool(x_nchw):
    n, c, h, w = x_nchw.shape
    return x_nchw.reshape(n, c, h // 2, 2, w // 2, 2).mean(axis=(3, 5))


# --------------------------------------------------------------------------
if __name__ == "__main__":
    key = jax.random.PRNGKey(0)
    kx, kw_, kb = jax.random.split(key, 3)

    N, C, H, W = 2, 4, 16, 16
    x = jax.random.normal(kx, (N, C, H, W), dtype=jnp.float32)

    # Deterministic synthetic Conv2d(C, C, kernel_size=3) parameters (OIHW + bias).
    params = {
        "weight": 0.1 * jax.random.normal(kw_, (C, C, 3, 3), dtype=jnp.float32),
        "bias": 0.05 * jax.random.normal(kb, (C,), dtype=jnp.float32),
    }

    # with_conv = True
    y_conv = jax.block_until_ready(downsample(x, params, with_conv=True))
    ref_conv = _ref_conv(x, params)
    assert y_conv.shape == (N, C, H // 2, W // 2), y_conv.shape
    assert jnp.allclose(y_conv, ref_conv, atol=1e-4, rtol=1e-4), \
        float(jnp.max(jnp.abs(y_conv - ref_conv)))

    # with_conv = False
    y_pool = jax.block_until_ready(downsample(x, params, with_conv=False))
    ref_pool = _ref_avgpool(x)
    assert y_pool.shape == (N, C, H // 2, W // 2), y_pool.shape
    assert jnp.allclose(y_pool, ref_pool, atol=1e-5, rtol=1e-5), \
        float(jnp.max(jnp.abs(y_pool - ref_pool)))

    print("KERNEL_OK")
</pallas_src>

<mosaic_0001>
module attributes {stable_mosaic.version = 11 : i64} {
  func.func @_conv_down_kernel(%arg0: i32, %arg1: i32, %arg2: memref<1x8x2x9x8xf32, #tpu.memory_space<vmem>>, %arg3: memref<1x1x1x9x8xf32, #tpu.memory_space<vmem>>, %arg4: memref<3x8x4xf32, #tpu.memory_space<vmem>>, %arg5: memref<3x4x4xf32, #tpu.memory_space<vmem>>, %arg6: memref<1x4xf32, #tpu.memory_space<vmem>>, %arg7: memref<1x8x8x4xf32, #tpu.memory_space<vmem>>) attributes {dimension_semantics = [#tpu.dimension_semantics<parallel>, #tpu.dimension_semantics<parallel>], iteration_bounds = array<i64: 2, 1>, scalar_prefetch = 0 : i64, scratch_operands = 0 : i64, tpu.core_type = #tpu.core_type<tc>, window_params = [{transform_indices = @transform_0, window_bounds = array<i64: 1, 8, 2, 9, 8>}, {transform_indices = @transform_1, window_bounds = array<i64: 1, 1, 1, 9, 8>}, {pipeline_mode = #tpu.pipeline_mode<synchronous>, transform_indices = @transform_2, window_bounds = array<i64: 3, 8, 4>}, {pipeline_mode = #tpu.pipeline_mode<synchronous>, transform_indices = @transform_3, window_bounds = array<i64: 3, 4, 4>}, {pipeline_mode = #tpu.pipeline_mode<synchronous>, transform_indices = @transform_4, window_bounds = array<i64: 1, 4>}, {transform_indices = @transform_5, window_bounds = array<i64: 1, 8, 8, 4>}]} {
    %c0 = arith.constant 0 : index
    %c0_0 = arith.constant 0 : index
    %c0_1 = arith.constant 0 : index
    %c0_2 = arith.constant 0 : index
    %c0_3 = arith.constant 0 : index
    %0 = vector.load %arg2[%c0, %c0_0, %c0_1, %c0_2, %c0_3] : memref<1x8x2x9x8xf32, #tpu.memory_space<vmem>>, vector<1x8x1x9x8xf32>
    %1 = vector.shape_cast %0 : vector<1x8x1x9x8xf32> to vector<8x9x8xf32>
    %c0_4 = arith.constant 0 : index
    %c0_5 = arith.constant 0 : index
    %c1 = arith.constant 1 : index
    %c0_6 = arith.constant 0 : index
    %c0_7 = arith.constant 0 : index
    %2 = vector.load %arg2[%c0_4, %c0_5, %c1, %c0_6, %c0_7] : memref<1x8x2x9x8xf32, #tpu.memory_space<vmem>>, vector<1x8x1x9x8xf32>
    %3 = vector.shape_cast %2 : vector<1x8x1x9x8xf32> to vector<8x9x8xf32>
    %4 = vector.extract_strided_slice %1 {offsets = [0, 0, 0], sizes = [8, 8, 8], strides = [1, 1, 1]} : vector<8x9x8xf32> to vector<8x8x8xf32>
    %5 = vector.shape_cast %4 : vector<8x8x8xf32> to vector<64x8xf32>
    %c0_8 = arith.constant 0 : index
    %c0_9 = arith.constant 0 : index
    %c0_10 = arith.constant 0 : index
    %6 = vector.load %arg4[%c0_8, %c0_9, %c0_10] : memref<3x8x4xf32, #tpu.memory_space<vmem>>, vector<1x8x4xf32>
    %7 = vector.shape_cast %6 : vector<1x8x4xf32> to vector<8x4xf32>
    %cst = arith.constant dense<0.000000e+00> : vector<64x4xf32>
    %8 = tpu.matmul %5, %7, %cst {dimension_numbers = #tpu.dot_dimension_numbers<[1], [0], [0], [1], [0, 0, 1, 1], [], []>} : vector<64x8xf32>, vector<8x4xf32>, vector<64x4xf32> -> vector<64x4xf32>
    %c0_11 = arith.constant 0 : index
    %c0_12 = arith.constant 0 : index
    %9 = vector.load %arg6[%c0_11, %c0_12] : memref<1x4xf32, #tpu.memory_space<vmem>>, vector<1x4xf32>
    %10 = vector.broadcast %9 : vector<1x4xf32> to vector<64x4xf32>
    %11 = arith.addf %8, %10 : vector<64x4xf32>
    %12 = vector.extract_strided_slice %1 {offsets = [0, 1, 0], sizes = [8, 8, 4], strides = [1, 1, 1]} : vector<8x9x8xf32> to vector<8x8x4xf32>
    %13 = vector.shape_cast %12 : vector<8x8x4xf32> to vector<64x4xf32>
    %c0_13 = arith.constant 0 : index
    %c0_14 = arith.constant 0 : index
    %c0_15 = arith.constant 0 : index
    %14 = vector.load %arg5[%c0_13, %c0_14, %c0_15] : memref<3x4x4xf32, #tpu.memory_space<vmem>>, vector<1x4x4xf32>
    %15 = vector.shape_cast %14 : vector<1x4x4xf32> to vector<4x4xf32>
    %cst_16 = arith.constant dense<0.000000e+00> : vector<64x4xf32>
    %16 = tpu.matmul %13, %15, %cst_16 {dimension_numbers = #tpu.dot_dimension_numbers<[1], [0], [0], [1], [0, 0, 1, 1], [], []>} : vector<64x4xf32>, vector<4x4xf32>, vector<64x4xf32> -> vector<64x4xf32>
    %17 = arith.addf %11, %16 : vector<64x4xf32>
    %18 = vector.extract_strided_slice %3 {offsets = [0, 0, 0], sizes = [8, 8, 8], strides = [1, 1, 1]} : vector<8x9x8xf32> to vector<8x8x8xf32>
    %19 = vector.shape_cast %18 : vector<8x8x8xf32> to vector<64x8xf32>
    %c1_17 = arith.constant 1 : index
    %c0_18 = arith.constant 0 : index
    %c0_19 = arith.constant 0 : index
    %20 = vector.load %arg4[%c1_17, %c0_18, %c0_19] : memref<3x8x4xf32, #tpu.memory_space<vmem>>, vector<1x8x4xf32>
    %21 = vector.shape_cast %20 : vector<1x8x4xf32> to vector<8x4xf32>
    %cst_20 = arith.constant dense<0.000000e+00> : vector<64x4xf32>
    %22 = tpu.matmul %19, %21, %cst_20 {dimension_numbers = #tpu.dot_dimension_numbers<[1], [0], [0], [1], [0, 0, 1, 1], [], []>} : vector<64x8xf32>, vector<8x4xf32>, vector<64x4xf32> -> vector<64x4xf32>
    %23 = arith.addf %17, %22 : vector<64x4xf32>
    %24 = vector.extract_strided_slice %3 {offsets = [0, 1, 0], sizes = [8, 8, 4], strides = [1, 1, 1]} : vector<8x9x8xf32> to vector<8x8x4xf32>
    %25 = vector.shape_cast %24 : vector<8x8x4xf32> to vector<64x4xf32>
    %c1_21 = arith.constant 1 : index
    %c0_22 = arith.constant 0 : index
    %c0_23 = arith.constant 0 : index
    %26 = vector.load %arg5[%c1_21, %c0_22, %c0_23] : memref<3x4x4xf32, #tpu.memory_space<vmem>>, vector<1x4x4xf32>
    %27 = vector.shape_cast %26 : vector<1x4x4xf32> to vector<4x4xf32>
    %cst_24 = arith.constant dense<0.000000e+00> : vector<64x4xf32>
    %28 = tpu.matmul %25, %27, %cst_24 {dimension_numbers = #tpu.dot_dimension_numbers<[1], [0], [0], [1], [0, 0, 1, 1], [], []>} : vector<64x4xf32>, vector<4x4xf32>, vector<64x4xf32> -> vector<64x4xf32>
    %29 = arith.addf %23, %28 : vector<64x4xf32>
    %30 = vector.shape_cast %29 : vector<64x4xf32> to vector<8x8x4xf32>
    %c0_25 = arith.constant 0 : index
    %c0_26 = arith.constant 0 : index
    %c0_27 = arith.constant 0 : index
    %c0_28 = arith.constant 0 : index
    %c0_29 = arith.constant 0 : index
    %31 = vector.load %arg3[%c0_25, %c0_26, %c0_27, %c0_28, %c0_29] : memref<1x1x1x9x8xf32, #tpu.memory_space<vmem>>, vector<1x1x1x9x8xf32>
    %32 = vector.shape_cast %31 : vector<1x1x1x9x8xf32> to vector<9x8xf32>
    %33 = vector.extract_strided_slice %32 {offsets = [0, 0], sizes = [8, 8], strides = [1, 1]} : vector<9x8xf32> to vector<8x8xf32>
    %c2 = arith.constant 2 : index
    %c0_30 = arith.constant 0 : index
    %c0_31 = arith.constant 0 : index
    %34 = vector.load %arg4[%c2, %c0_30, %c0_31] : memref<3x8x4xf32, #tpu.memory_space<vmem>>, vector<1x8x4xf32>
    %35 = vector.shape_cast %34 : vector<1x8x4xf32> to vector<8x4xf32>
    %cst_32 = arith.constant dense<0.000000e+00> : vector<8x4xf32>
    %36 = tpu.matmul %33, %35, %cst_32 {dimension_numbers = #tpu.dot_dimension_numbers<[1], [0], [0], [1], [0, 0, 1, 1], [], []>} : vector<8x8xf32>, vector<8x4xf32>, vector<8x4xf32> -> vector<8x4xf32>
    %37 = vector.extract_strided_slice %32 {offsets = [1, 0], sizes = [8, 4], strides = [1, 1]} : vector<9x8xf32> to vector<8x4xf32>
    %c2_33 = arith.constant 2 : index
    %c0_34 = arith.constant 0 : index
    %c0_35 = arith.constant 0 : index
    %38 = vector.load %arg5[%c2_33, %c0_34, %c0_35] : memref<3x4x4xf32, #tpu.memory_space<vmem>>, vector<1x4x4xf32>
    %39 = vector.shape_cast %38 : vector<1x4x4xf32> to vector<4x4xf32>
    %cst_36 = arith.constant dense<0.000000e+00> : vector<8x4xf32>
    %40 = tpu.matmul %37, %39, %cst_36 {dimension_numbers = #tpu.dot_dimension_numbers<[1], [0], [0], [1], [0, 0, 1, 1], [], []>} : vector<8x4xf32>, vector<4x4xf32>, vector<8x4xf32> -> vector<8x4xf32>
    %41 = arith.addf %36, %40 : vector<8x4xf32>
    %c0_37 = arith.constant 0 : index
    %c1_38 = arith.constant 1 : index
    %c0_39 = arith.constant 0 : index
    %c0_40 = arith.constant 0 : index
    %c0_41 = arith.constant 0 : index
    %42 = vector.load %arg2[%c0_37, %c1_38, %c0_39, %c0_40, %c0_41] : memref<1x8x2x9x8xf32, #tpu.memory_space<vmem>>, vector<1x7x1x9x8xf32>
    %43 = vector.shape_cast %42 : vector<1x7x1x9x8xf32> to vector<7x9x8xf32>
    %44 = vector.extract_strided_slice %43 {offsets = [0, 0, 0], sizes = [7, 8, 8], strides = [1, 1, 1]} : vector<7x9x8xf32> to vector<7x8x8xf32>
    %45 = vector.shape_cast %44 : vector<7x8x8xf32> to vector<56x8xf32>
    %c2_42 = arith.constant 2 : index
    %c0_43 = arith.constant 0 : index
    %c0_44 = arith.constant 0 : index
    %46 = vector.load %arg4[%c2_42, %c0_43, %c0_44] : memref<3x8x4xf32, #tpu.memory_space<vmem>>, vector<1x8x4xf32>
    %47 = vector.shape_cast %46 : vector<1x8x4xf32> to vector<8x4xf32>
    %cst_45 = arith.constant dense<0.000000e+00> : vector<56x4xf32>
    %48 = tpu.matmul %45, %47, %cst_45 {dimension_numbers = #tpu.dot_dimension_numbers<[1], [0], [0], [1], [0, 0, 1, 1], [], []>} : vector<56x8xf32>, vector<8x4xf32>, vector<56x4xf32> -> vector<56x4xf32>
    %49 = vector.extract_strided_slice %43 {offsets = [0, 1, 0], sizes = [7, 8, 4], strides = [1, 1, 1]} : vector<7x9x8xf32> to vector<7x8x4xf32>
    %50 = vector.shape_cast %49 : vector<7x8x4xf32> to vector<56x4xf32>
    %c2_46 = arith.constant 2 : index
    %c0_47 = arith.constant 0 : index
    %c0_48 = arith.constant 0 : index
    %51 = vector.load %arg5[%c2_46, %c0_47, %c0_48] : memref<3x4x4xf32, #tpu.memory_space<vmem>>, vector<1x4x4xf32>
    %52 = vector.shape_cast %51 : vector<1x4x4xf32> to vector<4x4xf32>
    %cst_49 = arith.constant dense<0.000000e+00> : vector<56x4xf32>
    %53 = tpu.matmul %50, %52, %cst_49 {dimension_numbers = #tpu.dot_dimension_numbers<[1], [0], [0], [1], [0, 0, 1, 1], [], []>} : vector<56x4xf32>, vector<4x4xf32>, vector<56x4xf32> -> vector<56x4xf32>
    %54 = arith.addf %48, %53 : vector<56x4xf32>
    %55 = vector.extract_strided_slice %30 {offsets = [0, 0, 0], sizes = [7, 8, 4], strides = [1, 1, 1]} : vector<8x8x4xf32> to vector<7x8x4xf32>
    %56 = vector.shape_cast %54 : vector<56x4xf32> to vector<7x8x4xf32>
    %57 = arith.addf %55, %56 : vector<7x8x4xf32>
    %c0_50 = arith.constant 0 : index
    %c0_51 = arith.constant 0 : index
    %c0_52 = arith.constant 0 : index
    %c0_53 = arith.constant 0 : index
    %58 = vector.load %arg7[%c0_50, %c0_51, %c0_52, %c0_53] : memref<1x8x8x4xf32, #tpu.memory_space<vmem>>, vector<1x7x8x4xf32>
    %59 = vector.shape_cast %58 : vector<1x7x8x4xf32> to vector<7x8x4xf32>
    %60 = vector.shape_cast %57 : vector<7x8x4xf32> to vector<1x7x8x4xf32>
    tpu.vector_store %arg7[%c0_50, %c0_51, %c0_52, %c0_53], %60 {strides = array<i32>} : memref<1x8x8x4xf32, #tpu.memory_space<vmem>>, vector<1x7x8x4xf32>,
    %61 = vector.extract_strided_slice %30 {offsets = [7, 0, 0], sizes = [1, 8, 4], strides = [1, 1, 1]} : vector<8x8x4xf32> to vector<1x8x4xf32>
    %62 = vector.shape_cast %41 : vector<8x4xf32> to vector<1x8x4xf32>
    %63 = arith.addf %61, %62 : vector<1x8x4xf32>
    %c0_54 = arith.constant 0 : index
    %c7 = arith.constant 7 : index
    %c0_55 = arith.constant 0 : index
    %c0_56 = arith.constant 0 : index
    %64 = vector.load %arg7[%c0_54, %c7, %c0_55, %c0_56] : memref<1x8x8x4xf32, #tpu.memory_space<vmem>>, vector<1x1x8x4xf32>
    %65 = vector.shape_cast %64 : vector<1x1x8x4xf32> to vector<1x8x4xf32>
    %66 = vector.shape_cast %63 : vector<1x8x4xf32> to vector<1x1x8x4xf32>
    tpu.vector_store %arg7[%c0_54, %c7, %c0_55, %c0_56], %66 {strides = array<i32>} : memref<1x8x8x4xf32, #tpu.memory_space<vmem>>, vector<1x1x8x4xf32>,
    return
  }
  func.func @transform_0(%arg0: i32, %arg1: i32) -> (i32, i32, i32, i32, i32) {
    %c0_i32 = arith.constant 0 : i32
    %c0_i32_0 = arith.constant 0 : i32
    %c0_i32_1 = arith.constant 0 : i32
    %c0_i32_2 = arith.constant 0 : i32
    return %arg0, %arg1, %c0_i32, %c0_i32_0, %c0_i32_1 : i32, i32, i32, i32, i32
  }
  func.func @transform_1(%arg0: i32, %arg1: i32) -> (i32, i32, i32, i32, i32) {
    %c1_i32 = arith.constant 1 : i32
    %0 = arith.addi %arg1, %c1_i32 : i32
    %c8_i32 = arith.constant 8 : i32
    %1 = arith.muli %0, %c8_i32 : i32
    %c0_i32 = arith.constant 0 : i32
    %c0_i32_0 = arith.constant 0 : i32
    %c0_i32_1 = arith.constant 0 : i32
    %c0_i32_2 = arith.constant 0 : i32
    return %arg0, %1, %c0_i32, %c0_i32_0, %c0_i32_1 : i32, i32, i32, i32, i32
  }
  func.func @transform_2(%arg0: i32, %arg1: i32) -> (i32, i32, i32) {
    %c0_i32 = arith.constant 0 : i32
    %c0_i32_0 = arith.constant 0 : i32
    %c0_i32_1 = arith.constant 0 : i32
    %c0_i32_2 = arith.constant 0 : i32
    return %c0_i32, %c0_i32_0, %c0_i32_1 : i32, i32, i32
  }
  func.func @transform_3(%arg0: i32, %arg1: i32) -> (i32, i32, i32) {
    %c0_i32 = arith.constant 0 : i32
    %c0_i32_0 = arith.constant 0 : i32
    %c0_i32_1 = arith.constant 0 : i32
    %c0_i32_2 = arith.constant 0 : i32
    return %c0_i32, %c0_i32_0, %c0_i32_1 : i32, i32, i32
  }
  func.func @transform_4(%arg0: i32, %arg1: i32) -> (i32, i32) {
    %c0_i32 = arith.constant 0 : i32
    %c0_i32_0 = arith.constant 0 : i32
    %c0_i32_1 = arith.constant 0 : i32
    return %c0_i32, %c0_i32_0 : i32, i32
  }
  func.func @transform_5(%arg0: i32, %arg1: i32) -> (i32, i32, i32, i32) {
    %c0_i32 = arith.constant 0 : i32
    %c0_i32_0 = arith.constant 0 : i32
    %c0_i32_1 = arith.constant 0 : i32
    return %arg0, %arg1, %c0_i32, %c0_i32_0 : i32, i32, i32, i32
  }
}

</mosaic_0001>

<llo_original>
// kernel: tpu_custom_call.1
$region0: #{tpu_custom_call.1}
  #allocation0 [shape = 'u32[]', space=smem, size = 0x4, offset = 0x4, fixed_abs, tag = 'smem constant byte address 0x4 - core index']
  #allocation1 [shape = 'u32[144,128]{1,0:T(1,128)}', space=vmem, size = 0x12000, scoped, tag = 'internal scratch']
  %s0 = inlined_call_operand.vmem [shape: f32[2,9,2,9,8], index: 0, kind: input, shape index: {}]
  %s1 = inlined_call_operand.vmem [shape: f32[2,9,2,9,8], index: 1, kind: input, shape index: {}]
  %s2 = inlined_call_operand.vmem [shape: f32[3,8,4], index: 2, kind: input, shape index: {}]
  %s3 = inlined_call_operand.vmem [shape: f32[3,4,4], index: 3, kind: input, shape index: {}]
  %s4 = inlined_call_operand.vmem [shape: f32[1,4], index: 4, kind: input, shape index: {}]
  %s5 = inlined_call_operand.vmem [shape: f32[2,8,8,4], index: 5, kind: output, shape index: {}]
  %s6 = sld [smem:[#allocation0]]
  $region53: #{tpu_custom_call.1} parent=0
    _
  %s8 = ssub.s32 1, %s6
  %s9 = scalar_select 0, %s8, %s6
  loop: start=0, step=1, limit=4
  $region2: #{tpu_custom_call.1} parent=0 // loop_pre_header
    _
  $region3: #{tpu_custom_call.1} parent=0 // loop_header
    %s11 = sphi 0, %s15
    %p12 = scmp.ge.s32.totalorder %s11, 4
    %s18 = sphi 0, %s30
    %s19 = sphi 0, %s26
    %s20 = sphi 0, %s18
    %s21 = sphi 0, %s19
    %s22 = sphi 0, %s20
    %s23 = sphi 0, %s21
    %s35 = sphi 0, %s37
    %s38 = sphi 0, %s35
    %s39 = sphi 0, %s38
    %s55 = sphi 0, %s39
    %s67 = sphi 0, %s69
    %s70 = sphi 0, %s67
    %s71 = sphi 0, %s70
    %s87 = sphi 0, %s71
    %s91 = sphi 0, %s91
    %s93 = sphi 0, %s91
    %s94 = sphi 0, %s93
    %s108 = sphi 0, %s94
    %s112 = sphi 0, %s112
    %s114 = sphi 0, %s112
    %s115 = sphi 0, %s114
    %s129 = sphi 0, %s115
    %s133 = sphi 0, %s133
    %s135 = sphi 0, %s133
    %s136 = sphi 0, %s135
    %s150 = sphi 0, %s136
    %s158 = sphi 0, %s160
    %s161 = sphi 0, %s158
    %s162 = sphi 0, %s161
    %s178 = sphi 0, %s162
  $region4: #{tpu_custom_call.1} parent=0 // loop_header_branch
    %14 = sbr.rel (%p12) target = $region8
  $region5: #{tpu_custom_call.1} parent=0 // loop_body
    %s16 = ssub.s32 %s11, 1
    %s17 = ssub.s32 %s11, 2
    %s24 = sadd.s32 1, %s19
    %p25 = scmp.ge.s32.totalorder %s24, 1
    %s26 = scalar_select %p25, 0, %s24
    %s27 = sadd.s32 1, %s18
    %s28 = scalar_select %p25, %s27, %s18
    %p29 = scmp.ge.s32.totalorder %s28, 2
    %s30 = scalar_select %p29, 0, %s28
    %s31 = ssub.s32 %s18, %s30
    %s32 = ssub.s32 %s19, %s26
    %s33 = sor.u32 %s31, %s32
    %p34 = scmp.eq.s32.totalorder %s33, 0
    %s36 = sadd.s32 %s35, 1
    %s37 = scalar_select %p34, %s35, %s36
    %p40 = pneg %p34
    %p41 = scmp.eq.s32.totalorder %s11, 1
    %p42 = por %p40, %p41
    %p43 = scmp.ne.s32.totalorder %s35, %s38
    %p44 = scmp.eq.s32.totalorder %s11, 0
    %p45 = por %p43, %p44
    %p46 = scmp.ne.s32.totalorder %s35, %s38
    %p47 = scmp.eq.s32.totalorder %s16, 1
    %p48 = por %p46, %p47
    %p49 = scmp.ne.s32.totalorder %s38, %s39
    %p50 = scmp.eq.s32.totalorder %s16, 0
    %p51 = por %p49, %p50
    %p52 = scmp.ne.s32.totalorder %s38, %s39
    %p53 = scmp.eq.s32.totalorder %s17, 1
    %p54 = por %p52, %p53
    %p56 = scmp.ne.s32.totalorder %s39, %s55
    %p57 = scmp.eq.s32.totalorder %s17, 0
    %p58 = por %p56, %p57
    %s59 = sadd.s32 %s19, 1
    %s60 = smul.u32 %s59, 8
    %s61 = sadd.s32 %s26, 1
    %s62 = smul.u32 %s61, 8
    %s63 = ssub.s32 %s18, %s30
    %s64 = ssub.s32 %s60, %s62
    %s65 = sor.u32 %s63, %s64
    %p66 = scmp.eq.s32.totalorder %s65, 0
    %s68 = sadd.s32 %s67, 1
    %s69 = scalar_select %p66, %s67, %s68
    %p72 = pneg %p66
    %p73 = scmp.eq.s32.totalorder %s11, 1
    %p74 = por %p72, %p73
    %p75 = scmp.ne.s32.totalorder %s67, %s70
    %p76 = scmp.eq.s32.totalorder %s11, 0
    %p77 = por %p75, %p76
    %p78 = scmp.ne.s32.totalorder %s67, %s70
    %p79 = scmp.eq.s32.totalorder %s16, 1
    %p80 = por %p78, %p79
    %p81 = scmp.ne.s32.totalorder %s70, %s71
    %p82 = scmp.eq.s32.totalorder %s16, 0
    %p83 = por %p81, %p82
    %p84 = scmp.ne.s32.totalorder %s70, %s71
    %p85 = scmp.eq.s32.totalorder %s17, 1
    %p86 = por %p84, %p85
    %p88 = scmp.ne.s32.totalorder %s71, %s87
    %p89 = scmp.eq.s32.totalorder %s17, 0
    %p90 = por %p88, %p89
    %s92 = sadd.s32 %s91, 1
    %p95 = scmp.eq.s32.totalorder %s11, 1
    %p96 = scmp.ne.s32.totalorder %s91, %s93
    %p97 = scmp.eq.s32.totalorder %s11, 0
    %p98 = por %p96, %p97
    %p99 = scmp.ne.s32.totalorder %s91, %s93
    %p100 = scmp.eq.s32.totalorder %s16, 1
    %p101 = por %p99, %p100
    %p102 = scmp.ne.s32.totalorder %s93, %s94
    %p103 = scmp.eq.s32.totalorder %s16, 0
    %p104 = por %p102, %p103
    %p105 = scmp.ne.s32.totalorder %s93, %s94
    %p106 = scmp.eq.s32.totalorder %s17, 1
    %p107 = por %p105, %p106
    %p109 = scmp.ne.s32.totalorder %s94, %s108
    %p110 = scmp.eq.s32.totalorder %s17, 0
    %p111 = por %p109, %p110
    %s113 = sadd.s32 %s112, 1
    %p116 = scmp.eq.s32.totalorder %s11, 1
    %p117 = scmp.ne.s32.totalorder %s112, %s114
    %p118 = scmp.eq.s32.totalorder %s11, 0
    %p119 = por %p117, %p118
    %p120 = scmp.ne.s32.totalorder %s112, %s114
    %p121 = scmp.eq.s32.totalorder %s16, 1
    %p122 = por %p120, %p121
    %p123 = scmp.ne.s32.totalorder %s114, %s115
    %p124 = scmp.eq.s32.totalorder %s16, 0
    %p125 = por %p123, %p124
    %p126 = scmp.ne.s32.totalorder %s114, %s115
    %p127 = scmp.eq.s32.totalorder %s17, 1
    %p128 = por %p126, %p127
    %p130 = scmp.ne.s32.totalorder %s115, %s129
    %p131 = scmp.eq.s32.totalorder %s17, 0
    %p132 = por %p130, %p131
    %s134 = sadd.s32 %s133, 1
    %p137 = scmp.eq.s32.totalorder %s11, 1
    %p138 = scmp.ne.s32.totalorder %s133, %s135
    %p139 = scmp.eq.s32.totalorder %s11, 0
    %p140 = por %p138, %p139
    %p141 = scmp.ne.s32.totalorder %s133, %s135
    %p142 = scmp.eq.s32.totalorder %s16, 1
    %p143 = por %p141, %p142
    %p144 = scmp.ne.s32.totalorder %s135, %s136
    %p145 = scmp.eq.s32.totalorder %s16, 0
    %p146 = por %p144, %p145
    %p147 = scmp.ne.s32.totalorder %s135, %s136
    %p148 = scmp.eq.s32.totalorder %s17, 1
    %p149 = por %p147, %p148
    %p151 = scmp.ne.s32.totalorder %s136, %s150
    %p152 = scmp.eq.s32.totalorder %s17, 0
    %p153 = por %p151, %p152
    %s154 = ssub.s32 %s18, %s30
    %s155 = ssub.s32 %s19, %s26
    %s156 = sor.u32 %s154, %s155
    %p157 = scmp.eq.s32.totalorder %s156, 0
    %s159 = sadd.s32 %s158, 1
    %s160 = scalar_select %p157, %s158, %s159
    %p163 = pneg %p157
    %p164 = scmp.eq.s32.totalorder %s11, 1
    %p165 = por %p163, %p164
    %p166 = scmp.ne.s32.totalorder %s158, %s161
    %p167 = scmp.eq.s32.totalorder %s11, 0
    %p168 = por %p166, %p167
    %p169 = scmp.ne.s32.totalorder %s158, %s161
    %p170 = scmp.eq.s32.totalorder %s16, 1
    %p171 = por %p169, %p170
    %p172 = scmp.ne.s32.totalorder %s161, %s162
    %p173 = scmp.eq.s32.totalorder %s16, 0
    %p174 = por %p172, %p173
    %p175 = scmp.ne.s32.totalorder %s161, %s162
    %p176 = scmp.eq.s32.totalorder %s17, 1
    %p177 = por %p175, %p176
    %p179 = scmp.ne.s32.totalorder %s162, %s178
    %p180 = scmp.eq.s32.totalorder %s17, 0
    %p181 = por %p179, %p180
    %p182 = scmp.le.s32.totalorder 1, %s11
    %p183 = scmp.lt.s32.totalorder %s11, 3
    %p184 = pnand %p182, %p183
    %p185 = pneg %p184
    // Predicated region
    $region9: #{tpu_custom_call.1} parent=5 // pred_check
      _
    $region10: #{tpu_custom_call.1} parent=5 // pred_check_branch
      %187 = sbr.rel (%p184) target = $region12
    $region11: #{tpu_custom_call.1} parent=5 // pred_region
      %s188 = ssub.s32 %s11, 1
      // Predicated region
      $region13: #{tpu_custom_call.1} parent=11 // pred_check
        %p189 = pneg %p104
      $region14: #{tpu_custom_call.1} parent=11 // pred_check_branch
        %191 = sbr.rel (%p189) target = $region16
      $region15: #{tpu_custom_call.1} parent=11 // pred_region
        _
      $region16: #{tpu_custom_call.1} parent=11 // pred_fallthru
        _
      // Predicated region
      $region17: #{tpu_custom_call.1} parent=11 // pred_check
        %p192 = pneg %p125
      $region18: #{tpu_custom_call.1} parent=11 // pred_check_branch
        %194 = sbr.rel (%p192) target = $region20
      $region19: #{tpu_custom_call.1} parent=11 // pred_region
        _
      $region20: #{tpu_custom_call.1} parent=11 // pred_fallthru
        _
      // Predicated region
      $region21: #{tpu_custom_call.1} parent=11 // pred_check
        %p195 = pneg %p146
      $region22: #{tpu_custom_call.1} parent=11 // pred_check_branch
        %197 = sbr.rel (%p195) target = $region24
      $region23: #{tpu_custom_call.1} parent=11 // pred_region
        _
      $region24: #{tpu_custom_call.1} parent=11 // pred_fallthru
        _
    $region12: #{tpu_custom_call.1} parent=5 // pred_fallthru
      _
    %p198 = scmp.lt.s32.totalorder %s11, 2
    // Predicated region
    $region25: #{tpu_custom_call.1} parent=5 // pred_check
      %p199 = pneg %p198
    $region26: #{tpu_custom_call.1} parent=5 // pred_check_branch
      %201 = sbr.rel (%p199) target = $region28
    $region27: #{tpu_custom_call.1} parent=5 // pred_region
      // Predicated region
      $region29: #{tpu_custom_call.1} parent=27 // pred_check
        %p202 = pneg %p45
      $region30: #{tpu_custom_call.1} parent=27 // pred_check_branch
        %204 = sbr.rel (%p202) target = $region32
      $region31: #{tpu_custom_call.1} parent=27 // pred_region
        %s205 = smul.u32 8, %s19
        %s206 = ssub.s32 9, %s205
        %p207 = scmp.lt.s32.totalorder %s206, 8
        %s208 = scalar_select %p207, %s206, 8
        %s209 = smul.u32 128, %s208
        %s210 = smul.u32 %s209, 2
        %s211 = smul.u32 %s210, 2
        %p212 = scmp.lt.s32.totalorder %s18, 1
        %s213 = scalar_select %p212, %s18, 1
        %p214 = scmp.lt.s32.totalorder %s205, 8
        %s215 = scalar_select %p214, %s205, 8
        %s216 = smul.addr %s215, 4
        %s217 = smul.addr %s213, 36
        %s218 = sadd.s32 %s216, %s217
        %s219 = smul.addr %s218, 8
        %s220 = scalar_lea.vmem %s0, %s219
        %s221 = smul.u32 8, %s19
        %s222 = ssub.s32 9, %s221
        %p223 = scmp.lt.s32.totalorder %s222, 8
        %s224 = scalar_select %p223, %s222, 8
        %s225 = smul.u32 128, %s224
        %s226 = smul.u32 %s225, 2
        %s227 = smul.u32 %s226, 2
      $region32: #{tpu_custom_call.1} parent=27 // pred_fallthru
        _
      // Predicated region
      $region33: #{tpu_custom_call.1} parent=27 // pred_check
        %p228 = pneg %p77
      $region34: #{tpu_custom_call.1} parent=27 // pred_check_branch
        %230 = sbr.rel (%p228) target = $region36
      $region35: #{tpu_custom_call.1} parent=27 // pred_region
        %s231 = sadd.s32 %s19, 1
        %s232 = smul.u32 %s231, 8
        %p233 = scmp.lt.s32.totalorder %s18, 1
        %s234 = scalar_select %p233, %s18, 1
        %p235 = scmp.lt.s32.totalorder %s232, 8
        %s236 = scalar_select %p235, %s232, 8
        %s237 = smul.addr %s236, 4
        %s238 = smul.addr %s234, 36
        %s239 = sadd.s32 %s237, %s238
        %s240 = smul.addr %s239, 8
        %s241 = scalar_lea.vmem %s1, %s240
        %s242 = sadd.s32 %s19, 1
        %s243 = smul.u32 %s242, 8
      $region36: #{tpu_custom_call.1} parent=27 // pred_fallthru
        _
    $region28: #{tpu_custom_call.1} parent=5 // pred_fallthru
      _
    %p244 = scmp.le.s32.totalorder 1, %s11
    %p245 = scmp.lt.s32.totalorder %s11, 3
    %p246 = pnand %p244, %p245
    %p247 = pneg %p246
    // Predicated region
    $region37: #{tpu_custom_call.1} parent=5 // pred_check
      _
    $region38: #{tpu_custom_call.1} parent=5 // pred_check_branch
      %249 = sbr.rel (%p246) target = $region40
    $region39: #{tpu_custom_call.1} parent=5 // pred_region
      %s250 = ssub.s32 %s11, 1
      %s251 = smul.u32 8, %s21
      %s252 = ssub.s32 9, %s251
      %p253 = scmp.lt.s32.totalorder %s252, 8
      %s254 = scalar_select %p253, %s252, 8
      %s255 = smul.u32 128, %s254
      %s256 = smul.u32 %s255, 2
      %s257 = smul.u32 %s256, 2
      %p258 = scmp.lt.s32.totalorder %s20, 1
      %s259 = scalar_select %p258, %s20, 1
      %p260 = scmp.lt.s32.totalorder %s251, 8
      %s261 = scalar_select %p260, %s251, 8
      %s262 = smul.addr %s261, 4
      %s263 = smul.addr %s259, 36
      %s264 = sadd.s32 %s262, %s263
      %s265 = smul.addr %s264, 8
      %s266 = scalar_lea.vmem %s0, %s265
      %p267 = pneg %p51
      %p268 = pneg %p48
      %s269 = sadd.s32 %s21, 1
      %s270 = smul.u32 %s269, 8
      %p271 = scmp.lt.s32.totalorder %s20, 1
      %s272 = scalar_select %p271, %s20, 1
      %p273 = scmp.lt.s32.totalorder %s270, 8
      %s274 = scalar_select %p273, %s270, 8
      %s275 = smul.addr %s274, 4
      %s276 = smul.addr %s272, 36
      %s277 = sadd.s32 %s275, %s276
      %s278 = smul.addr %s277, 8
      %s279 = scalar_lea.vmem %s1, %s278
      %p280 = pneg %p83
      %p281 = pneg %p80
      %p282 = pneg %p104
      %p283 = pneg %p101
      %p284 = pneg %p125
      %p285 = pneg %p122
      %p286 = pneg %p146
      %p287 = pneg %p143
      %p288 = pneg %p174
      %p289 = pneg %p171
      %s290 = smul.u32 8, %s21
      %p291 = scmp.lt.s32.totalorder %s20, 1
      %s292 = scalar_select %p291, %s20, 1
      %p293 = scmp.lt.s32.totalorder %s290, 7
      %s294 = scalar_select %p293, %s290, 7
      %s295 = smul.addr %s292, 8
      %s296 = sadd.s32 %s294, %s295
      %s297 = smul.addr %s296, 8
      %s298 = scalar_lea.vmem %s5, %s297
      %s299 = smul.u32 8, %s21
      %s300 = ssub.s32 9, %s299
      %p301 = scmp.lt.s32.totalorder %s300, 8
      %s302 = scalar_select %p301, %s300, 8
      %s303 = smul.u32 128, %s302
      %s304 = smul.u32 %s303, 2
      %s305 = smul.u32 %s304, 2
      %p306 = scmp.lt.s32.totalorder %s20, 1
      %s307 = scalar_select %p306, %s20, 1
      %p308 = scmp.lt.s32.totalorder %s299, 8
      %s309 = scalar_select %p308, %s299, 8
      %s310 = smul.addr %s309, 4
      %s311 = smul.addr %s307, 36
      %s312 = sadd.s32 %s310, %s311
      %s313 = smul.addr %s312, 8
      %s314 = scalar_lea.vmem %s0, %s313
      %s315 = smul.u32 8, %s21
      %s316 = ssub.s32 9, %s315
      %p317 = scmp.lt.s32.totalorder %s316, 8
      %s318 = scalar_select %p317, %s316, 8
      %s319 = smul.u32 128, %s318
      %s320 = smul.u32 %s319, 2
      %s321 = smul.u32 %s320, 2
      %s322 = sadd.s32 %s21, 1
      %s323 = smul.u32 %s322, 8
      %p324 = scmp.lt.s32.totalorder %s20, 1
      %s325 = scalar_select %p324, %s20, 1
      %p326 = scmp.lt.s32.totalorder %s323, 8
      %s327 = scalar_select %p326, %s323, 8
      %s328 = smul.addr %s327, 4
      %s329 = smul.addr %s325, 36
      %s330 = sadd.s32 %s328, %s329
      %s331 = smul.addr %s330, 8
      %s332 = scalar_lea.vmem %s1, %s331
      %s333 = sadd.s32 %s21, 1
      %s334 = smul.u32 %s333, 8
      %s335 = smul.u32 8, %s21
      %p336 = scmp.lt.s32.totalorder %s20, 1
      %s337 = scalar_select %p336, %s20, 1
      %p338 = scmp.lt.s32.totalorder %s335, 7
      %s339 = scalar_select %p338, %s335, 7
      %s340 = smul.addr %s337, 8
      %s341 = sadd.s32 %s339, %s340
      %s342 = smul.addr %s341, 8
      %s343 = scalar_lea.vmem %s5, %s342
      %s344 = smul.u32 8, %s21
      %v345 = vld [vmem:[%s314] sm:$0xff]
      %v346 = vld [vmem:[%s314 + $0x8] sm:$0x1]
      %v347 = vld [vmem:[%s314 + $0x20] sm:$0xff]
      %v348 = vld [vmem:[%s314 + $0x28] sm:$0x1]
      %v349 = vld [vmem:[%s314 + $0x40] sm:$0xff]
      %v350 = vld [vmem:[%s314 + $0x48] sm:$0x1]
      %v351 = vld [vmem:[%s314 + $0x60] sm:$0xff]
      %v352 = vld [vmem:[%s314 + $0x68] sm:$0x1]
      %v353 = vld [vmem:[%s314 + $0x80] sm:$0xff]
      %v354 = vld [vmem:[%s314 + $0x88] sm:$0x1]
      %v355 = vld [vmem:[%s314 + $0xa0] sm:$0xff]
      %v356 = vld [vmem:[%s314 + $0xa8] sm:$0x1]
      %v357 = vld [vmem:[%s314 + $0xc0] sm:$0xff]
      %v358 = vld [vmem:[%s314 + $0xc8] sm:$0x1]
      %v359 = vld [vmem:[%s314 + $0xe0] sm:$0xff]
      %v360 = vld [vmem:[%s314 + $0xe8] sm:$0x1]
      %s361 = scalar_lea.vmem %s314, 16
      %v362 = vld [vmem:[%s361] sm:$0xff]
      %v363 = vld [vmem:[%s361 + $0x8] sm:$0x1]
      %v364 = vld [vmem:[%s361 + $0x20] sm:$0xff]
      %v365 = vld [vmem:[%s361 + $0x28] sm:$0x1]
      %v366 = vld [vmem:[%s361 + $0x40] sm:$0xff]
      %v367 = vld [vmem:[%s361 + $0x48] sm:$0x1]
      %v368 = vld [vmem:[%s361 + $0x60] sm:$0xff]
      %v369 = vld [vmem:[%s361 + $0x68] sm:$0x1]
      %v370 = vld [vmem:[%s361 + $0x80] sm:$0xff]
      %v371 = vld [vmem:[%s361 + $0x88] sm:$0x1]
      %v372 = vld [vmem:[%s361 + $0xa0] sm:$0xff]
      %v373 = vld [vmem:[%s361 + $0xa8] sm:$0x1]
      %v374 = vld [vmem:[%s361 + $0xc0] sm:$0xff]
      %v375 = vld [vmem:[%s361 + $0xc8] sm:$0x1]
      %v376 = vld [vmem:[%s361 + $0xe0] sm:$0xff]
      %v377 = vld [vmem:[%s361 + $0xe8] sm:$0x1]
      %v378 = vld [vmem:[%s2] sm:$0xff]
      %v379 = vld [vmem:[%s4] sm:$0x1]
      %v381 = vlaneseq
      %v382 = vshrl.u32 %v381, 7
      %v383 = vsub.s32 0, %v382
      %v384 = vrot.slane %v379, %v383
      %vm386 = vcmask 64512
      %v388 = vsel %vm386, %v345, 0
      %v391 = vsel %vm386, %v347, 0
      %v394 = vsel %vm386, %v349, 0
      %v397 = vsel %vm386, %v351, 0
      %v400 = vsel %vm386, %v353, 0
      %v403 = vsel %vm386, %v355, 0
      %v406 = vsel %vm386, %v357, 0
      %v409 = vsel %vm386, %v359, 0
      %411 = vmatprep.subr.mxu0 0.0
      %412 = vmatpush1.msra.mxu0 %v378
      %413 = vmatprep.subr.mxu0 0.0
      %414 = vmatpush1.msra.mxu0 0.0
      %415 = vmatprep.subr.mxu0 0.0
      %416 = vmatpush1.msra.mxu0 0.0
      %417 = vmatprep.subr.mxu0 0.0
      %418 = vmatpush1.msra.mxu0 0.0
      %419 = vmatprep.subr.mxu0 0.0
      %420 = vmatpush1.msra.mxu0 0.0
      %421 = vmatprep.subr.mxu0 0.0
      %422 = vmatpush1.msra.mxu0 0.0
      %423 = vmatprep.subr.mxu0 0.0
      %424 = vmatpush1.msra.mxu0 0.0
      %425 = vmatprep.subr.mxu0 0.0
      %426 = vmatpush1.msra.mxu0 0.0
      %427 = vmatprep.subr.mxu0 0.0
      %428 = vmatpush1.msra.mxu0 0.0
      %429 = vmatprep.subr.mxu0 0.0
      %430 = vmatpush1.msra.mxu0 0.0
      %431 = vmatprep.subr.mxu0 0.0
      %432 = vmatpush1.msra.mxu0 0.0
      %433 = vmatprep.subr.mxu0 0.0
      %434 = vmatpush1.msra.mxu0 0.0
      %435 = vmatprep.subr.mxu0 0.0
      %436 = vmatpush1.msra.mxu0 0.0
      %437 = vmatprep.subr.mxu0 0.0
      %438 = vmatpush1.msra.mxu0 0.0
      %439 = vmatprep.subr.mxu0 0.0
      %440 = vmatpush1.msra.mxu0 0.0
      %441 = vmatprep.subr.mxu0 0.0
      %442 = vmatpush1.msra.mxu0 0.0
      %443 = vmatprep.subr.mxu0 0.0
      %444 = vmatpush1.msra.mxu0 0.0
      %445 = vmatprep.subr.mxu0 0.0
      %446 = vmatpush1.msra.mxu0 0.0
      %447 = vmatprep.subr.mxu0 0.0
      %448 = vmatpush1.msra.mxu0 0.0
      %449 = vmatprep.subr.mxu0 0.0
      %450 = vmatpush1.msra.mxu0 0.0
      %451 = vmatprep.subr.mxu0 0.0
      %452 = vmatpush1.msra.mxu0 0.0
      %453 = vmatprep.subr.mxu0 0.0
      %454 = vmatpush1.msra.mxu0 0.0
      %455 = vmatprep.subr.mxu0 0.0
      %456 = vmatpush1.msra.mxu0 0.0
      %457 = vmatprep.subr.mxu0 0.0
      %458 = vmatpush1.msra.mxu0 0.0
      %459 = vmatprep.subr.mxu0 0.0
      %460 = vmatpush1.msra.mxu0 0.0
      %461 = vmatprep.subr.mxu0 0.0
      %462 = vmatpush1.msra.mxu0 0.0
      %463 = vmatprep.subr.mxu0 0.0
      %464 = vmatpush1.msra.mxu0 0.0
      %465 = vmatprep.subr.mxu0 0.0
      %466 = vmatpush1.msra.mxu0 0.0
      %467 = vmatprep.subr.mxu0 0.0
      %468 = vmatpush1.msra.mxu0 0.0
      %469 = vmatprep.subr.mxu0 0.0
      %470 = vmatpush1.msra.mxu0 0.0
      %471 = vmatprep.subr.mxu0 0.0
      %472 = vmatpush1.msra.mxu0 0.0
      %473 = vmatprep.subr.mxu0 0.0
      %474 = vmatpush1.msra.mxu0 0.0
      %475 = vmatprep.mubr.f32.mxu0 0.0
      %476 = vmatmul.mubr.f32.gmra.mrb[0].mxu0 %v388
      %v477 = vpop.f32.mrb[0].mxu0
      %v478 = vadd.f32 %v384, %v477
      %v479 = vpop.f32.mrb[0].mxu0
      %480 = vmatprep.mubr.f32.mxu0 0.0
      %481 = vmatmul.mubr.f32.gmra.mrb[0].mxu0 %v391
      %v482 = vpop.f32.mrb[0].mxu0
      %v483 = vadd.f32 %v384, %v482
      %v484 = vpop.f32.mrb[0].mxu0
      %485 = vmatprep.mubr.f32.mxu0 0.0
      %486 = vmatmul.mubr.f32.gmra.mrb[0].mxu0 %v394
      %v487 = vpop.f32.mrb[0].mxu0
      %v488 = vadd.f32 %v384, %v487
      %v489 = vpop.f32.mrb[0].mxu0
      %490 = vmatprep.mubr.f32.mxu0 0.0
      %491 = vmatmul.mubr.f32.gmra.mrb[0].mxu0 %v397
      %v492 = vpop.f32.mrb[0].mxu0
      %v493 = vadd.f32 %v384, %v492
      %v494 = vpop.f32.mrb[0].mxu0
      %495 = vmatprep.mubr.f32.mxu0 0.0
      %496 = vmatmul.mubr.f32.gmra.mrb[0].mxu0 %v400
      %v497 = vpop.f32.mrb[0].mxu0
      %v498 = vadd.f32 %v384, %v497
      %v499 = vpop.f32.mrb[0].mxu0
      %500 = vmatprep.mubr.f32.mxu0 0.0
      %501 = vmatmul.mubr.f32.gmra.mrb[0].mxu0 %v403
      %v502 = vpop.f32.mrb[0].mxu0
      %v503 = vadd.f32 %v384, %v502
      %v504 = vpop.f32.mrb[0].mxu0
      %505 = vmatprep.mubr.f32.mxu0 0.0
      %506 = vmatmul.mubr.f32.gmra.mrb[0].mxu0 %v406
      %v507 = vpop.f32.mrb[0].mxu0
      %v508 = vadd.f32 %v384, %v507
      %v509 = vpop.f32.mrb[0].mxu0
      %510 = vmatprep.mubr.f32.mxu0 0.0
      %511 = vmatmul.mubr.f32.gmra.mrb[0].mxu0 %v409
      %v512 = vpop.f32.mrb[0].mxu0
      %v513 = vadd.f32 %v384, %v512
      %v514 = vpop.f32.mrb[0].mxu0
      %515 = vdwg.mxu0
      %vm524 = vcmask 1046528
      %v525 = vrot.slane %v345, 1
      %v526 = vrot.slane %v346, 1
      %v527 = vsel %vm524, %v525, %v526
      %v528 = vrot.slane %v347, 1
      %v529 = vrot.slane %v348, 1
      %v530 = vsel %vm524, %v528, %v529
      %v531 = vrot.slane %v349, 1
      %v532 = vrot.slane %v350, 1
      %v533 = vsel %vm524, %v531, %v532
      %v534 = vrot.slane %v351, 1
      %v535 = vrot.slane %v352, 1
      %v536 = vsel %vm524, %v534, %v535
      %v537 = vrot.slane %v353, 1
      %v538 = vrot.slane %v354, 1
      %v539 = vsel %vm524, %v537, %v538
      %v540 = vrot.slane %v355, 1
      %v541 = vrot.slane %v356, 1
      %v542 = vsel %vm524, %v540, %v541
      %v543 = vrot.slane %v357, 1
      %v544 = vrot.slane %v358, 1
      %v545 = vsel %vm524, %v543, %v544
      %v546 = vrot.slane %v359, 1
      %v547 = vrot.slane %v360, 1
      %v548 = vsel %vm524, %v546, %v547
      %v549 = vld [vmem:[%s3] sm:$0xf]
      %vm550 = vcmask 31744
      %v551 = vsel %vm550, %v527, 0
      %v553 = vsel %vm550, %v530, 0
      %v555 = vsel %vm550, %v533, 0
      %v557 = vsel %vm550, %v536, 0
      %v559 = vsel %vm550, %v539, 0
      %v561 = vsel %vm550, %v542, 0
      %v563 = vsel %vm550, %v545, 0
      %v565 = vsel %vm550, %v548, 0
      %vm567 = vcmask 1043456
      %v569 = vsel %vm567, %v549, 0
      %571 = vmatprep.subr.mxu0 0.0
      %572 = vmatpush1.msra.mxu0 %v569
      %573 = vmatprep.subr.mxu0 0.0
      %574 = vmatpush1.msra.mxu0 0.0
      %575 = vmatprep.subr.mxu0 0.0
      %576 = vmatpush1.msra.mxu0 0.0
      %577 = vmatprep.subr.mxu0 0.0
      %578 = vmatpush1.msra.mxu0 0.0
      %579 = vmatprep.subr.mxu0 0.0
      %580 = vmatpush1.msra.mxu0 0.0
      %581 = vmatprep.subr.mxu0 0.0
      %582 = vmatpush1.msra.mxu0 0.0
      %583 = vmatprep.subr.mxu0 0.0
      %584 = vmatpush1.msra.mxu0 0.0
      %585 = vmatprep.subr.mxu0 0.0
      %586 = vmatpush1.msra.mxu0 0.0
      %587 = vmatprep.subr.mxu0 0.0
      %588 = vmatpush1.msra.mxu0 0.0
      %589 = vmatprep.subr.mxu0 0.0
      %590 = vmatpush1.msra.mxu0 0.0
      %591 = vmatprep.subr.mxu0 0.0
      %592 = vmatpush1.msra.mxu0 0.0
      %593 = vmatprep.subr.mxu0 0.0
      %594 = vmatpush1.msra.mxu0 0.0
      %595 = vmatprep.subr.mxu0 0.0
      %596 = vmatpush1.msra.mxu0 0.0
      %597 = vmatprep.subr.mxu0 0.0
      %598 = vmatpush1.msra.mxu0 0.0
      %599 = vmatprep.subr.mxu0 0.0
      %600 = vmatpush1.msra.mxu0 0.0
      %601 = vmatprep.subr.mxu0 0.0
      %602 = vmatpush1.msra.mxu0 0.0
      %603 = vmatprep.subr.mxu0 0.0
      %604 = vmatpush1.msra.mxu0 0.0
      %605 = vmatprep.subr.mxu0 0.0
      %606 = vmatpush1.msra.mxu0 0.0
      %607 = vmatprep.subr.mxu0 0.0
      %608 = vmatpush1.msra.mxu0 0.0
      %609 = vmatprep.subr.mxu0 0.0
      %610 = vmatpush1.msra.mxu0 0.0
      %611 = vmatprep.subr.mxu0 0.0
      %612 = vmatpush1.msra.mxu0 0.0
      %613 = vmatprep.subr.mxu0 0.0
      %614 = vmatpush1.msra.mxu0 0.0
      %615 = vmatprep.subr.mxu0 0.0
      %616 = vmatpush1.msra.mxu0 0.0
      %617 = vmatprep.subr.mxu0 0.0
      %618 = vmatpush1.msra.mxu0 0.0
      %619 = vmatprep.subr.mxu0 0.0
      %620 = vmatpush1.msra.mxu0 0.0
      %621 = vmatprep.subr.mxu0 0.0
      %622 = vmatpush1.msra.mxu0 0.0
      %623 = vmatprep.subr.mxu0 0.0
      %624 = vmatpush1.msra.mxu0 0.0
      %625 = vmatprep.subr.mxu0 0.0
      %626 = vmatpush1.msra.mxu0 0.0
      %627 = vmatprep.subr.mxu0 0.0
      %628 = vmatpush1.msra.mxu0 0.0
      %629 = vmatprep.subr.mxu0 0.0
      %630 = vmatpush1.msra.mxu0 0.0
      %631 = vmatprep.subr.mxu0 0.0
      %632 = vmatpush1.msra.mxu0 0.0
      %633 = vmatprep.subr.mxu0 0.0
      %634 = vmatpush1.msra.mxu0 0.0
      %635 = vmatprep.mubr.f32.mxu0 0.0
      %636 = vmatmul.mubr.f32.gmra.mrb[0].mxu0 %v551
      %v637 = vpop.f32.mrb[0].mxu0
      %v638 = vadd.f32 0.0, %v637
      %v639 = vpop.f32.mrb[0].mxu0
      %640 = vmatprep.mubr.f32.mxu0 0.0
      %641 = vmatmul.mubr.f32.gmra.mrb[0].mxu0 %v553
      %v642 = vpop.f32.mrb[0].mxu0
      %v643 = vadd.f32 0.0, %v642
      %v644 = vpop.f32.mrb[0].mxu0
      %645 = vmatprep.mubr.f32.mxu0 0.0
      %646 = vmatmul.mubr.f32.gmra.mrb[0].mxu0 %v555
      %v647 = vpop.f32.mrb[0].mxu0
      %v648 = vadd.f32 0.0, %v647
      %v649 = vpop.f32.mrb[0].mxu0
      %650 = vmatprep.mubr.f32.mxu0 0.0
      %651 = vmatmul.mubr.f32.gmra.mrb[0].mxu0 %v557
      %v652 = vpop.f32.mrb[0].mxu0
      %v653 = vadd.f32 0.0, %v652
      %v654 = vpop.f32.mrb[0].mxu0
      %655 = vmatprep.mubr.f32.mxu0 0.0
      %656 = vmatmul.mubr.f32.gmra.mrb[0].mxu0 %v559
      %v657 = vpop.f32.mrb[0].mxu0
      %v658 = vadd.f32 0.0, %v657
      %v659 = vpop.f32.mrb[0].mxu0
      %660 = vmatprep.mubr.f32.mxu0 0.0
      %661 = vmatmul.mubr.f32.gmra.mrb[0].mxu0 %v561
      %v662 = vpop.f32.mrb[0].mxu0
      %v663 = vadd.f32 0.0, %v662
      %v664 = vpop.f32.mrb[0].mxu0
      %665 = vmatprep.mubr.f32.mxu0 0.0
      %666 = vmatmul.mubr.f32.gmra.mrb[0].mxu0 %v563
      %v667 = vpop.f32.mrb[0].mxu0
      %v668 = vadd.f32 0.0, %v667
      %v669 = vpop.f32.mrb[0].mxu0
      %670 = vmatprep.mubr.f32.mxu0 0.0
      %671 = vmatmul.mubr.f32.gmra.mrb[0].mxu0 %v565
      %v672 = vpop.f32.mrb[0].mxu0
      %v673 = vadd.f32 0.0, %v672
      %v674 = vpop.f32.mrb[0].mxu0
      %675 = vdwg.mxu0
      %v676 = vadd.f32 %v478, %v638
      %v677 = vadd.f32 %v483, %v643
      %v678 = vadd.f32 %v488, %v648
      %v679 = vadd.f32 %v493, %v653
      %v680 = vadd.f32 %v498, %v658
      %v681 = vadd.f32 %v503, %v663
      %v682 = vadd.f32 %v508, %v668
      %v683 = vadd.f32 %v513, %v673
      %s684 = scalar_lea.vmem %s2, 8
      %v685 = vld [vmem:[%s684] sm:$0xff]
      %v687 = vsel %vm386, %v362, 0
      %v690 = vsel %vm386, %v364, 0
      %v693 = vsel %vm386, %v366, 0
      %v696 = vsel %vm386, %v368, 0
      %v699 = vsel %vm386, %v370, 0
      %v702 = vsel %vm386, %v372, 0
      %v705 = vsel %vm386, %v374, 0
      %v708 = vsel %vm386, %v376, 0
      %710 = vmatprep.subr.mxu0 0.0
      %711 = vmatpush1.msra.mxu0 %v685
      %712 = vmatprep.subr.mxu0 0.0
      %713 = vmatpush1.msra.mxu0 0.0
      %714 = vmatprep.subr.mxu0 0.0
      %715 = vmatpush1.msra.mxu0 0.0
      %716 = vmatprep.subr.mxu0 0.0
      %717 = vmatpush1.msra.mxu0 0.0
      %718 = vmatprep.subr.mxu0 0.0
      %719 = vmatpush1.msra.mxu0 0.0
      %720 = vmatprep.subr.mxu0 0.0
      %721 = vmatpush1.msra.mxu0 0.0
      %722 = vmatprep.subr.mxu0 0.0
      %723 = vmatpush1.msra.mxu0 0.0
      %724 = vmatprep.subr.mxu0 0.0
      %725 = vmatpush1.msra.mxu0 0.0
      %726 = vmatprep.subr.mxu0 0.0
      %727 = vmatpush1.msra.mxu0 0.0
      %728 = vmatprep.subr.mxu0 0.0
      %729 = vmatpush1.msra.mxu0 0.0
      %730 = vmatprep.subr.mxu0 0.0
      %731 = vmatpush1.msra.mxu0 0.0
      %732 = vmatprep.subr.mxu0 0.0
      %733 = vmatpush1.msra.mxu0 0.0
      %734 = vmatprep.subr.mxu0 0.0
      %735 = vmatpush1.msra.mxu0 0.0
      %736 = vmatprep.subr.mxu0 0.0
      %737 = vmatpush1.msra.mxu0 0.0
      %738 = vmatprep.subr.mxu0 0.0
      %739 = vmatpush1.msra.mxu0 0.0
      %740 = vmatprep.subr.mxu0 0.0
      %741 = vmatpush1.msra.mxu0 0.0
      %742 = vmatprep.subr.mxu0 0.0
      %743 = vmatpush1.msra.mxu0 0.0
      %744 = vmatprep.subr.mxu0 0.0
      %745 = vmatpush1.msra.mxu0 0.0
      %746 = vmatprep.subr.mxu0 0.0
      %747 = vmatpush1.msra.mxu0 0.0
      %748 = vmatprep.subr.mxu0 0.0
      %749 = vmatpush1.msra.mxu0 0.0
      %750 = vmatprep.subr.mxu0 0.0
      %751 = vmatpush1.msra.mxu0 0.0
      %752 = vmatprep.subr.mxu0 0.0
      %753 = vmatpush1.msra.mxu0 0.0
      %754 = vmatprep.subr.mxu0 0.0
      %755 = vmatpush1.msra.mxu0 0.0
      %756 = vmatprep.subr.mxu0 0.0
      %757 = vmatpush1.msra.mxu0 0.0
      %758 = vmatprep.subr.mxu0 0.0
      %759 = vmatpush1.msra.mxu0 0.0
      %760 = vmatprep.subr.mxu0 0.0
      %761 = vmatpush1.msra.mxu0 0.0
      %762 = vmatprep.subr.mxu0 0.0
      %763 = vmatpush1.msra.mxu0 0.0
      %764 = vmatprep.subr.mxu0 0.0
      %765 = vmatpush1.msra.mxu0 0.0
      %766 = vmatprep.subr.mxu0 0.0
      %767 = vmatpush1.msra.mxu0 0.0
      %768 = vmatprep.subr.mxu0 0.0
      %769 = vmatpush1.msra.mxu0 0.0
      %770 = vmatprep.subr.mxu0 0.0
      %771 = vmatpush1.msra.mxu0 0.0
      %772 = vmatprep.subr.mxu0 0.0
      %773 = vmatpush1.msra.mxu0 0.0
      %774 = vmatprep.mubr.f32.mxu0 0.0
      %775 = vmatmul.mubr.f32.gmra.mrb[0].mxu0 %v687
      %v776 = vpop.f32.mrb[0].mxu0
      %v777 = vadd.f32 0.0, %v776
      %v778 = vpop.f32.mrb[0].mxu0
      %779 = vmatprep.mubr.f32.mxu0 0.0
      %780 = vmatmul.mubr.f32.gmra.mrb[0].mxu0 %v690
      %v781 = vpop.f32.mrb[0].mxu0
      %v782 = vadd.f32 0.0, %v781
      %v783 = vpop.f32.mrb[0].mxu0
      %784 = vmatprep.mubr.f32.mxu0 0.0
      %785 = vmatmul.mubr.f32.gmra.mrb[0].mxu0 %v693
      %v786 = vpop.f32.mrb[0].mxu0
      %v787 = vadd.f32 0.0, %v786
      %v788 = vpop.f32.mrb[0].mxu0
      %789 = vmatprep.mubr.f32.mxu0 0.0
      %790 = vmatmul.mubr.f32.gmra.mrb[0].mxu0 %v696
      %v791 = vpop.f32.mrb[0].mxu0
      %v792 = vadd.f32 0.0, %v791
      %v793 = vpop.f32.mrb[0].mxu0
      %794 = vmatprep.mubr.f32.mxu0 0.0
      %795 = vmatmul.mubr.f32.gmra.mrb[0].mxu0 %v699
      %v796 = vpop.f32.mrb[0].mxu0
      %v797 = vadd.f32 0.0, %v796
      %v798 = vpop.f32.mrb[0].mxu0
      %799 = vmatprep.mubr.f32.mxu0 0.0
      %800 = vmatmul.mubr.f32.gmra.mrb[0].mxu0 %v702
      %v801 = vpop.f32.mrb[0].mxu0
      %v802 = vadd.f32 0.0, %v801
      %v803 = vpop.f32.mrb[0].mxu0
      %804 = vmatprep.mubr.f32.mxu0 0.0
      %805 = vmatmul.mubr.f32.gmra.mrb[0].mxu0 %v705
      %v806 = vpop.f32.mrb[0].mxu0
      %v807 = vadd.f32 0.0, %v806
      %v808 = vpop.f32.mrb[0].mxu0
      %809 = vmatprep.mubr.f32.mxu0 0.0
      %810 = vmatmul.mubr.f32.gmra.mrb[0].mxu0 %v708
      %v811 = vpop.f32.mrb[0].mxu0
      %v812 = vadd.f32 0.0, %v811
      %v813 = vpop.f32.mrb[0].mxu0
      %814 = vdwg.mxu0
      %v815 = vadd.f32 %v676, %v777
      %v816 = vadd.f32 %v677, %v782
      %v817 = vadd.f32 %v678, %v787
      %v818 = vadd.f32 %v679, %v792
      %v819 = vadd.f32 %v680, %v797
      %v820 = vadd.f32 %v681, %v802
      %v821 = vadd.f32 %v682, %v807
      %v822 = vadd.f32 %v683, %v812
      %v831 = vrot.slane %v362, 1
      %v832 = vrot.slane %v363, 1
      %v833 = vsel %vm524, %v831, %v832
      %v834 = vrot.slane %v364, 1
      %v835 = vrot.slane %v365, 1
      %v836 = vsel %vm524, %v834, %v835
      %v837 = vrot.slane %v366, 1
      %v838 = vrot.slane %v367, 1
      %v839 = vsel %vm524, %v837, %v838
      %v840 = vrot.slane %v368, 1
      %v841 = vrot.slane %v369, 1
      %v842 = vsel %vm524, %v840, %v841
      %v843 = vrot.slane %v370, 1
      %v844 = vrot.slane %v371, 1
      %v845 = vsel %vm524, %v843, %v844
      %v846 = vrot.slane %v372, 1
      %v847 = vrot.slane %v373, 1
      %v848 = vsel %vm524, %v846, %v847
      %v849 = vrot.slane %v374, 1
      %v850 = vrot.slane %v375, 1
      %v851 = vsel %vm524, %v849, %v850
      %v852 = vrot.slane %v376, 1
      %v853 = vrot.slane %v377, 1
      %v854 = vsel %vm524, %v852, %v853
      %s855 = scalar_lea.vmem %s3, 4
      %v856 = vld [vmem:[%s855] sm:$0xf]
      %v857 = vsel %vm550, %v833, 0
      %v859 = vsel %vm550, %v836, 0
      %v861 = vsel %vm550, %v839, 0
      %v863 = vsel %vm550, %v842, 0
      %v865 = vsel %vm550, %v845, 0
      %v867 = vsel %vm550, %v848, 0
      %v869 = vsel %vm550, %v851, 0
      %v871 = vsel %vm550, %v854, 0
      %v874 = vsel %vm567, %v856, 0
      %876 = vmatprep.subr.mxu0 0.0
      %877 = vmatpush1.msra.mxu0 %v874
      %878 = vmatprep.subr.mxu0 0.0
      %879 = vmatpush1.msra.mxu0 0.0
      %880 = vmatprep.subr.mxu0 0.0
      %881 = vmatpush1.msra.mxu0 0.0
      %882 = vmatprep.subr.mxu0 0.0
      %883 = vmatpush1.msra.mxu0 0.0
      %884 = vmatprep.subr.mxu0 0.0
      %885 = vmatpush1.msra.mxu0 0.0
      %886 = vmatprep.subr.mxu0 0.0
      %887 = vmatpush1.msra.mxu0 0.0
      %888 = vmatprep.subr.mxu0 0.0
      %889 = vmatpush1.msra.mxu0 0.0
      %890 = vmatprep.subr.mxu0 0.0
      %891 = vmatpush1.msra.mxu0 0.0
      %892 = vmatprep.subr.mxu0 0.0
      %893 = vmatpush1.msra.mxu0 0.0
      %894 = vmatprep.subr.mxu0 0.0
      %895 = vmatpush1.msra.mxu0 0.0
      %896 = vmatprep.subr.mxu0 0.0
      %897 = vmatpush1.msra.mxu0 0.0
      %898 = vmatprep.subr.mxu0 0.0
      %899 = vmatpush1.msra.mxu0 0.0
      %900 = vmatprep.subr.mxu0 0.0
      %901 = vmatpush1.msra.mxu0 0.0
      %902 = vmatprep.subr.mxu0 0.0
      %903 = vmatpush1.msra.mxu0 0.0
      %904 = vmatprep.subr.mxu0 0.0
      %905 = vmatpush1.msra.mxu0 0.0
      %906 = vmatprep.subr.mxu0 0.0
      %907 = vmatpush1.msra.mxu0 0.0
      %908 = vmatprep.subr.mxu0 0.0
      %909 = vmatpush1.msra.mxu0 0.0
      %910 = vmatprep.subr.mxu0 0.0
      %911 = vmatpush1.msra.mxu0 0.0
      %912 = vmatprep.subr.mxu0 0.0
      %913 = vmatpush1.msra.mxu0 0.0
      %914 = vmatprep.subr.mxu0 0.0
      %915 = vmatpush1.msra.mxu0 0.0
      %916 = vmatprep.subr.mxu0 0.0
      %917 = vmatpush1.msra.mxu0 0.0
      %918 = vmatprep.subr.mxu0 0.0
      %919 = vmatpush1.msra.mxu0 0.0
      %920 = vmatprep.subr.mxu0 0.0
      %921 = vmatpush1.msra.mxu0 0.0
      %922 = vmatprep.subr.mxu0 0.0
      %923 = vmatpush1.msra.mxu0 0.0
      %924 = vmatprep.subr.mxu0 0.0
      %925 = vmatpush1.msra.mxu0 0.0
      %926 = vmatprep.subr.mxu0 0.0
      %927 = vmatpush1.msra.mxu0 0.0
      %928 = vmatprep.subr.mxu0 0.0
      %929 = vmatpush1.msra.mxu0 0.0
      %930 = vmatprep.subr.mxu0 0.0
      %931 = vmatpush1.msra.mxu0 0.0
      %932 = vmatprep.subr.mxu0 0.0
      %933 = vmatpush1.msra.mxu0 0.0
      %934 = vmatprep.subr.mxu0 0.0
      %935 = vmatpush1.msra.mxu0 0.0
      %936 = vmatprep.subr.mxu0 0.0
      %937 = vmatpush1.msra.mxu0 0.0
      %938 = vmatprep.subr.mxu0 0.0
      %939 = vmatpush1.msra.mxu0 0.0
      %940 = vmatprep.mubr.f32.mxu0 0.0
      %941 = vmatmul.mubr.f32.gmra.mrb[0].mxu0 %v857
      %v942 = vpop.f32.mrb[0].mxu0
      %v943 = vadd.f32 0.0, %v942
      %v944 = vpop.f32.mrb[0].mxu0
      %945 = vmatprep.mubr.f32.mxu0 0.0
      %946 = vmatmul.mubr.f32.gmra.mrb[0].mxu0 %v859
      %v947 = vpop.f32.mrb[0].mxu0
      %v948 = vadd.f32 0.0, %v947
      %v949 = vpop.f32.mrb[0].mxu0
      %950 = vmatprep.mubr.f32.mxu0 0.0
      %951 = vmatmul.mubr.f32.gmra.mrb[0].mxu0 %v861
      %v952 = vpop.f32.mrb[0].mxu0
      %v953 = vadd.f32 0.0, %v952
      %v954 = vpop.f32.mrb[0].mxu0
      %955 = vmatprep.mubr.f32.mxu0 0.0
      %956 = vmatmul.mubr.f32.gmra.mrb[0].mxu0 %v863
      %v957 = vpop.f32.mrb[0].mxu0
      %v958 = vadd.f32 0.0, %v957
      %v959 = vpop.f32.mrb[0].mxu0
      %960 = vmatprep.mubr.f32.mxu0 0.0
      %961 = vmatmul.mubr.f32.gmra.mrb[0].mxu0 %v865
      %v962 = vpop.f32.mrb[0].mxu0
      %v963 = vadd.f32 0.0, %v962
      %v964 = vpop.f32.mrb[0].mxu0
      %965 = vmatprep.mubr.f32.mxu0 0.0
      %966 = vmatmul.mubr.f32.gmra.mrb[0].mxu0 %v867
      %v967 = vpop.f32.mrb[0].mxu0
      %v968 = vadd.f32 0.0, %v967
      %v969 = vpop.f32.mrb[0].mxu0
      %970 = vmatprep.mubr.f32.mxu0 0.0
      %971 = vmatmul.mubr.f32.gmra.mrb[0].mxu0 %v869
      %v972 = vpop.f32.mrb[0].mxu0
      %v973 = vadd.f32 0.0, %v972
      %v974 = vpop.f32.mrb[0].mxu0
      %975 = vmatprep.mubr.f32.mxu0 0.0
      %976 = vmatmul.mubr.f32.gmra.mrb[0].mxu0 %v871
      %v977 = vpop.f32.mrb[0].mxu0
      %v978 = vadd.f32 0.0, %v977
      %v979 = vpop.f32.mrb[0].mxu0
      %980 = vdwg.mxu0
      %v981 = vadd.f32 %v815, %v943
      %v982 = vadd.f32 %v816, %v948
      %v983 = vadd.f32 %v817, %v953
      %v984 = vadd.f32 %v818, %v958
      %v985 = vadd.f32 %v819, %v963
      %v986 = vadd.f32 %v820, %v968
      %v987 = vadd.f32 %v821, %v973
      %v988 = vadd.f32 %v822, %v978
      %v989 = vld [vmem:[%s332] sm:$0xff]
      %v990 = vld [vmem:[%s332 + $0x8] sm:$0x1]
      %s991 = scalar_lea.vmem %s2, 16
      %v992 = vld [vmem:[%s991] sm:$0xff]
      %s993 = scalar_lea.vmem %s3, 8
      %v994 = vld [vmem:[%s993] sm:$0xf]
      %v997 = vrot.slane %v989, 1
      %v998 = vrot.slane %v990, 1
      %v999 = vsel %vm524, %v997, %v998
      %v1000 = vsel %vm550, %v999, 0
      %v1003 = vsel %vm567, %v994, 0
      %1005 = vmatprep.subr.mxu0 0.0
      %1006 = vmatpush1.msra.mxu0 %v1003
      %1007 = vmatprep.subr.mxu0 0.0
      %1008 = vmatpush1.msra.mxu0 0.0
      %1009 = vmatprep.subr.mxu0 0.0
      %1010 = vmatpush1.msra.mxu0 0.0
      %1011 = vmatprep.subr.mxu0 0.0
      %1012 = vmatpush1.msra.mxu0 0.0
      %1013 = vmatprep.subr.mxu0 0.0
      %1014 = vmatpush1.msra.mxu0 0.0
      %1015 = vmatprep.subr.mxu0 0.0
      %1016 = vmatpush1.msra.mxu0 0.0
      %1017 = vmatprep.subr.mxu0 0.0
      %1018 = vmatpush1.msra.mxu0 0.0
      %1019 = vmatprep.subr.mxu0 0.0
      %1020 = vmatpush1.msra.mxu0 0.0
      %1021 = vmatprep.subr.mxu0 0.0
      %1022 = vmatpush1.msra.mxu0 0.0
      %1023 = vmatprep.subr.mxu0 0.0
      %1024 = vmatpush1.msra.mxu0 0.0
      %1025 = vmatprep.subr.mxu0 0.0
      %1026 = vmatpush1.msra.mxu0 0.0
      %1027 = vmatprep.subr.mxu0 0.0
      %1028 = vmatpush1.msra.mxu0 0.0
      %1029 = vmatprep.subr.mxu0 0.0
      %1030 = vmatpush1.msra.mxu0 0.0
      %1031 = vmatprep.subr.mxu0 0.0
      %1032 = vmatpush1.msra.mxu0 0.0
      %1033 = vmatprep.subr.mxu0 0.0
      %1034 = vmatpush1.msra.mxu0 0.0
      %1035 = vmatprep.subr.mxu0 0.0
      %1036 = vmatpush1.msra.mxu0 0.0
      %1037 = vmatprep.subr.mxu0 0.0
      %1038 = vmatpush1.msra.mxu0 0.0
      %1039 = vmatprep.subr.mxu0 0.0
      %1040 = vmatpush1.msra.mxu0 0.0
      %1041 = vmatprep.subr.mxu0 0.0
      %1042 = vmatpush1.msra.mxu0 0.0
      %1043 = vmatprep.subr.mxu0 0.0
      %1044 = vmatpush1.msra.mxu0 0.0
      %1045 = vmatprep.subr.mxu0 0.0
      %1046 = vmatpush1.msra.mxu0 0.0
      %1047 = vmatprep.subr.mxu0 0.0
      %1048 = vmatpush1.msra.mxu0 0.0
      %1049 = vmatprep.subr.mxu0 0.0
      %1050 = vmatpush1.msra.mxu0 0.0
      %1051 = vmatprep.subr.mxu0 0.0
      %1052 = vmatpush1.msra.mxu0 0.0
      %1053 = vmatprep.subr.mxu0 0.0
      %1054 = vmatpush1.msra.mxu0 0.0
      %1055 = vmatprep.subr.mxu0 0.0
      %1056 = vmatpush1.msra.mxu0 0.0
      %1057 = vmatprep.subr.mxu0 0.0
      %1058 = vmatpush1.msra.mxu0 0.0
      %1059 = vmatprep.subr.mxu0 0.0
      %1060 = vmatpush1.msra.mxu0 0.0
      %1061 = vmatprep.subr.mxu0 0.0
      %1062 = vmatpush1.msra.mxu0 0.0
      %1063 = vmatprep.subr.mxu0 0.0
      %1064 = vmatpush1.msra.mxu0 0.0
      %1065 = vmatprep.subr.mxu0 0.0
      %1066 = vmatpush1.msra.mxu0 0.0
      %1067 = vmatprep.subr.mxu0 0.0
      %1068 = vmatpush1.msra.mxu0 0.0
      %1069 = vmatprep.mubr.f32.mxu0 0.0
      %1070 = vmatmul.mubr.f32.gmra.mrb[0].mxu0 %v1000
      %v1071 = vpop.f32.mrb[0].mxu0
      %v1072 = vadd.f32 0.0, %v1071
      %v1073 = vpop.f32.mrb[0].mxu0
      %1074 = vdwg.mxu0
      %v1075 = vsel %vm386, %v989, 0
      %1077 = vmatprep.subr.mxu0 0.0
      %1078 = vmatpush1.msra.mxu0 %v992
      %1079 = vmatprep.subr.mxu0 0.0
      %1080 = vmatpush1.msra.mxu0 0.0
      %1081 = vmatprep.subr.mxu0 0.0
      %1082 = vmatpush1.msra.mxu0 0.0
      %1083 = vmatprep.subr.mxu0 0.0
      %1084 = vmatpush1.msra.mxu0 0.0
      %1085 = vmatprep.subr.mxu0 0.0
      %1086 = vmatpush1.msra.mxu0 0.0
      %1087 = vmatprep.subr.mxu0 0.0
      %1088 = vmatpush1.msra.mxu0 0.0
      %1089 = vmatprep.subr.mxu0 0.0
      %1090 = vmatpush1.msra.mxu0 0.0
      %1091 = vmatprep.subr.mxu0 0.0
      %1092 = vmatpush1.msra.mxu0 0.0
      %1093 = vmatprep.subr.mxu0 0.0
      %1094 = vmatpush1.msra.mxu0 0.0
      %1095 = vmatprep.subr.mxu0 0.0
      %1096 = vmatpush1.msra.mxu0 0.0
      %1097 = vmatprep.subr.mxu0 0.0
      %1098 = vmatpush1.msra.mxu0 0.0
      %1099 = vmatprep.subr.mxu0 0.0
      %1100 = vmatpush1.msra.mxu0 0.0
      %1101 = vmatprep.subr.mxu0 0.0
      %1102 = vmatpush1.msra.mxu0 0.0
      %1103 = vmatprep.subr.mxu0 0.0
      %1104 = vmatpush1.msra.mxu0 0.0
      %1105 = vmatprep.subr.mxu0 0.0
      %1106 = vmatpush1.msra.mxu0 0.0
      %1107 = vmatprep.subr.mxu0 0.0
      %1108 = vmatpush1.msra.mxu0 0.0
      %1109 = vmatprep.subr.mxu0 0.0
      %1110 = vmatpush1.msra.mxu0 0.0
      %1111 = vmatprep.subr.mxu0 0.0
      %1112 = vmatpush1.msra.mxu0 0.0
      %1113 = vmatprep.subr.mxu0 0.0
      %1114 = vmatpush1.msra.mxu0 0.0
      %1115 = vmatprep.subr.mxu0 0.0
      %1116 = vmatpush1.msra.mxu0 0.0
      %1117 = vmatprep.subr.mxu0 0.0
      %1118 = vmatpush1.msra.mxu0 0.0
      %1119 = vmatprep.subr.mxu0 0.0
      %1120 = vmatpush1.msra.mxu0 0.0
      %1121 = vmatprep.subr.mxu0 0.0
      %1122 = vmatpush1.msra.mxu0 0.0
      %1123 = vmatprep.subr.mxu0 0.0
      %1124 = vmatpush1.msra.mxu0 0.0
      %1125 = vmatprep.subr.mxu0 0.0
      %1126 = vmatpush1.msra.mxu0 0.0
      %1127 = vmatprep.subr.mxu0 0.0
      %1128 = vmatpush1.msra.mxu0 0.0
      %1129 = vmatprep.subr.mxu0 0.0
      %1130 = vmatpush1.msra.mxu0 0.0
      %1131 = vmatprep.subr.mxu0 0.0
      %1132 = vmatpush1.msra.mxu0 0.0
      %1133 = vmatprep.subr.mxu0 0.0
      %1134 = vmatpush1.msra.mxu0 0.0
      %1135 = vmatprep.subr.mxu0 0.0
      %1136 = vmatpush1.msra.mxu0 0.0
      %1137 = vmatprep.subr.mxu0 0.0
      %1138 = vmatpush1.msra.mxu0 0.0
      %1139 = vmatprep.subr.mxu0 0.0
      %1140 = vmatpush1.msra.mxu0 0.0
      %1141 = vmatprep.mubr.f32.mxu0 0.0
      %1142 = vmatmul.mubr.f32.gmra.mrb[0].mxu0 %v1075
      %v1143 = vpop.f32.mrb[0].mxu0
      %v1144 = vadd.f32 %v1072, %v1143
      %v1145 = vpop.f32.mrb[0].mxu0
      %1146 = vdwg.mxu0
      %s1147 = scalar_lea.vmem %s314, 32
      %v1148 = vld [vmem:[%s1147] sm:$0xff]
      %v1149 = vld [vmem:[%s1147 + $0x8] sm:$0x1]
      %v1150 = vld [vmem:[%s1147 + $0x20] sm:$0xff]
      %v1151 = vld [vmem:[%s1147 + $0x28] sm:$0x1]
      %v1152 = vld [vmem:[%s1147 + $0x40] sm:$0xff]
      %v1153 = vld [vmem:[%s1147 + $0x48] sm:$0x1]
      %v1154 = vld [vmem:[%s1147 + $0x60] sm:$0xff]
      %v1155 = vld [vmem:[%s1147 + $0x68] sm:$0x1]
      %v1156 = vld [vmem:[%s1147 + $0x80] sm:$0xff]
      %v1157 = vld [vmem:[%s1147 + $0x88] sm:$0x1]
      %v1158 = vld [vmem:[%s1147 + $0xa0] sm:$0xff]
      %v1159 = vld [vmem:[%s1147 + $0xa8] sm:$0x1]
      %v1160 = vld [vmem:[%s1147 + $0xc0] sm:$0xff]
      %v1161 = vld [vmem:[%s1147 + $0xc8] sm:$0x1]
      %v1176 = vrot.slane %v1148, 1
      %v1177 = vrot.slane %v1149, 1
      %v1178 = vsel %vm524, %v1176, %v1177
      %v1179 = vrot.slane %v1150, 1
      %v1180 = vrot.slane %v1151, 1
      %v1181 = vsel %vm524, %v1179, %v1180
      %v1182 = vrot.slane %v1152, 1
      %v1183 = vrot.slane %v1153, 1
      %v1184 = vsel %vm524, %v1182, %v1183
      %v1185 = vrot.slane %v1154, 1
      %v1186 = vrot.slane %v1155, 1
      %v1187 = vsel %vm524, %v1185, %v1186
      %v1188 = vrot.slane %v1156, 1
      %v1189 = vrot.slane %v1157, 1
      %v1190 = vsel %vm524, %v1188, %v1189
      %v1191 = vrot.slane %v1158, 1
      %v1192 = vrot.slane %v1159, 1
      %v1193 = vsel %vm524, %v1191, %v1192
      %v1194 = vrot.slane %v1160, 1
      %v1195 = vrot.slane %v1161, 1
      %v1196 = vsel %vm524, %v1194, %v1195
      %v1197 = vsel %vm550, %v1178, 0
      %v1199 = vsel %vm550, %v1181, 0
      %v1201 = vsel %vm550, %v1184, 0
      %v1203 = vsel %vm550, %v1187, 0
      %v1205 = vsel %vm550, %v1190, 0
      %v1207 = vsel %vm550, %v1193, 0
      %v1209 = vsel %vm550, %v1196, 0
      %1211 = vmatprep.subr.mxu0 0.0
      %1212 = vmatpush1.msra.mxu0 %v1003
      %1213 = vmatprep.subr.mxu0 0.0
      %1214 = vmatpush1.msra.mxu0 0.0
      %1215 = vmatprep.subr.mxu0 0.0
      %1216 = vmatpush1.msra.mxu0 0.0
      %1217 = vmatprep.subr.mxu0 0.0
      %1218 = vmatpush1.msra.mxu0 0.0
      %1219 = vmatprep.subr.mxu0 0.0
      %1220 = vmatpush1.msra.mxu0 0.0
      %1221 = vmatprep.subr.mxu0 0.0
      %1222 = vmatpush1.msra.mxu0 0.0
      %1223 = vmatprep.subr.mxu0 0.0
      %1224 = vmatpush1.msra.mxu0 0.0
      %1225 = vmatprep.subr.mxu0 0.0
      %1226 = vmatpush1.msra.mxu0 0.0
      %1227 = vmatprep.subr.mxu0 0.0
      %1228 = vmatpush1.msra.mxu0 0.0
      %1229 = vmatprep.subr.mxu0 0.0
      %1230 = vmatpush1.msra.mxu0 0.0
      %1231 = vmatprep.subr.mxu0 0.0
      %1232 = vmatpush1.msra.mxu0 0.0
      %1233 = vmatprep.subr.mxu0 0.0
      %1234 = vmatpush1.msra.mxu0 0.0
      %1235 = vmatprep.subr.mxu0 0.0
      %1236 = vmatpush1.msra.mxu0 0.0
      %1237 = vmatprep.subr.mxu0 0.0
      %1238 = vmatpush1.msra.mxu0 0.0
      %1239 = vmatprep.subr.mxu0 0.0
      %1240 = vmatpush1.msra.mxu0 0.0
      %1241 = vmatprep.subr.mxu0 0.0
      %1242 = vmatpush1.msra.mxu0 0.0
      %1243 = vmatprep.subr.mxu0 0.0
      %1244 = vmatpush1.msra.mxu0 0.0
      %1245 = vmatprep.subr.mxu0 0.0
      %1246 = vmatpush1.msra.mxu0 0.0
      %1247 = vmatprep.subr.mxu0 0.0
      %1248 = vmatpush1.msra.mxu0 0.0
      %1249 = vmatprep.subr.mxu0 0.0
      %1250 = vmatpush1.msra.mxu0 0.0
      %1251 = vmatprep.subr.mxu0 0.0
      %1252 = vmatpush1.msra.mxu0 0.0
      %1253 = vmatprep.subr.mxu0 0.0
      %1254 = vmatpush1.msra.mxu0 0.0
      %1255 = vmatprep.subr.mxu0 0.0
      %1256 = vmatpush1.msra.mxu0 0.0
      %1257 = vmatprep.subr.mxu0 0.0
      %1258 = vmatpush1.msra.mxu0 0.0
      %1259 = vmatprep.subr.mxu0 0.0
      %1260 = vmatpush1.msra.mxu0 0.0
      %1261 = vmatprep.subr.mxu0 0.0
      %1262 = vmatpush1.msra.mxu0 0.0
      %1263 = vmatprep.subr.mxu0 0.0
      %1264 = vmatpush1.msra.mxu0 0.0
      %1265 = vmatprep.subr.mxu0 0.0
      %1266 = vmatpush1.msra.mxu0 0.0
      %1267 = vmatprep.subr.mxu0 0.0
      %1268 = vmatpush1.msra.mxu0 0.0
      %1269 = vmatprep.subr.mxu0 0.0
      %1270 = vmatpush1.msra.mxu0 0.0
      %1271 = vmatprep.subr.mxu0 0.0
      %1272 = vmatpush1.msra.mxu0 0.0
      %1273 = vmatprep.subr.mxu0 0.0
      %1274 = vmatpush1.msra.mxu0 0.0
      %1275 = vmatprep.mubr.f32.mxu0 0.0
      %1276 = vmatmul.mubr.f32.gmra.mrb[0].mxu0 %v1197
      %v1277 = vpop.f32.mrb[0].mxu0
      %v1278 = vadd.f32 0.0, %v1277
      %v1279 = vpop.f32.mrb[0].mxu0
      %1280 = vmatprep.mubr.f32.mxu0 0.0
      %1281 = vmatmul.mubr.f32.gmra.mrb[0].mxu0 %v1199
      %v1282 = vpop.f32.mrb[0].mxu0
      %v1283 = vadd.f32 0.0, %v1282
      %v1284 = vpop.f32.mrb[0].mxu0
      %1285 = vmatprep.mubr.f32.mxu0 0.0
      %1286 = vmatmul.mubr.f32.gmra.mrb[0].mxu0 %v1201
      %v1287 = vpop.f32.mrb[0].mxu0
      %v1288 = vadd.f32 0.0, %v1287
      %v1289 = vpop.f32.mrb[0].mxu0
      %1290 = vmatprep.mubr.f32.mxu0 0.0
      %1291 = vmatmul.mubr.f32.gmra.mrb[0].mxu0 %v1203
      %v1292 = vpop.f32.mrb[0].mxu0
      %v1293 = vadd.f32 0.0, %v1292
      %v1294 = vpop.f32.mrb[0].mxu0
      %1295 = vmatprep.mubr.f32.mxu0 0.0
      %1296 = vmatmul.mubr.f32.gmra.mrb[0].mxu0 %v1205
      %v1297 = vpop.f32.mrb[0].mxu0
      %v1298 = vadd.f32 0.0, %v1297
      %v1299 = vpop.f32.mrb[0].mxu0
      %1300 = vmatprep.mubr.f32.mxu0 0.0
      %1301 = vmatmul.mubr.f32.gmra.mrb[0].mxu0 %v1207
      %v1302 = vpop.f32.mrb[0].mxu0
      %v1303 = vadd.f32 0.0, %v1302
      %v1304 = vpop.f32.mrb[0].mxu0
      %1305 = vmatprep.mubr.f32.mxu0 0.0
      %1306 = vmatmul.mubr.f32.gmra.mrb[0].mxu0 %v1209
      %v1307 = vpop.f32.mrb[0].mxu0
      %v1308 = vadd.f32 0.0, %v1307
      %v1309 = vpop.f32.mrb[0].mxu0
      %1310 = vdwg.mxu0
      %v1311 = vsel %vm386, %v1148, 0
      %v1313 = vsel %vm386, %v1150, 0
      %v1315 = vsel %vm386, %v1152, 0
      %v1317 = vsel %vm386, %v1154, 0
      %v1319 = vsel %vm386, %v1156, 0
      %v1321 = vsel %vm386, %v1158, 0
      %v1323 = vsel %vm386, %v1160, 0
      %1325 = vmatprep.subr.mxu0 0.0
      %1326 = vmatpush1.msra.mxu0 %v992
      %1327 = vmatprep.subr.mxu0 0.0
      %1328 = vmatpush1.msra.mxu0 0.0
      %1329 = vmatprep.subr.mxu0 0.0
      %1330 = vmatpush1.msra.mxu0 0.0
      %1331 = vmatprep.subr.mxu0 0.0
      %1332 = vmatpush1.msra.mxu0 0.0
      %1333 = vmatprep.subr.mxu0 0.0
      %1334 = vmatpush1.msra.mxu0 0.0
      %1335 = vmatprep.subr.mxu0 0.0
      %1336 = vmatpush1.msra.mxu0 0.0
      %1337 = vmatprep.subr.mxu0 0.0
      %1338 = vmatpush1.msra.mxu0 0.0
      %1339 = vmatprep.subr.mxu0 0.0
      %1340 = vmatpush1.msra.mxu0 0.0
      %1341 = vmatprep.subr.mxu0 0.0
      %1342 = vmatpush1.msra.mxu0 0.0
      %1343 = vmatprep.subr.mxu0 0.0
      %1344 = vmatpush1.msra.mxu0 0.0
      %1345 = vmatprep.subr.mxu0 0.0
      %1346 = vmatpush1.msra.mxu0 0.0
      %1347 = vmatprep.subr.mxu0 0.0
      %1348 = vmatpush1.msra.mxu0 0.0
      %1349 = vmatprep.subr.mxu0 0.0
      %1350 = vmatpush1.msra.mxu0 0.0
      %1351 = vmatprep.subr.mxu0 0.0
      %1352 = vmatpush1.msra.mxu0 0.0
      %1353 = vmatprep.subr.mxu0 0.0
      %1354 = vmatpush1.msra.mxu0 0.0
      %1355 = vmatprep.subr.mxu0 0.0
      %1356 = vmatpush1.msra.mxu0 0.0
      %1357 = vmatprep.subr.mxu0 0.0
      %1358 = vmatpush1.msra.mxu0 0.0
      %1359 = vmatprep.subr.mxu0 0.0
      %1360 = vmatpush1.msra.mxu0 0.0
      %1361 = vmatprep.subr.mxu0 0.0
      %1362 = vmatpush1.msra.mxu0 0.0
      %1363 = vmatprep.subr.mxu0 0.0
      %1364 = vmatpush1.msra.mxu0 0.0
      %1365 = vmatprep.subr.mxu0 0.0
      %1366 = vmatpush1.msra.mxu0 0.0
      %1367 = vmatprep.subr.mxu0 0.0
      %1368 = vmatpush1.msra.mxu0 0.0
      %1369 = vmatprep.subr.mxu0 0.0
      %1370 = vmatpush1.msra.mxu0 0.0
      %1371 = vmatprep.subr.mxu0 0.0
      %1372 = vmatpush1.msra.mxu0 0.0
      %1373 = vmatprep.subr.mxu0 0.0
      %1374 = vmatpush1.msra.mxu0 0.0
      %1375 = vmatprep.subr.mxu0 0.0
      %1376 = vmatpush1.msra.mxu0 0.0
      %1377 = vmatprep.subr.mxu0 0.0
      %1378 = vmatpush1.msra.mxu0 0.0
      %1379 = vmatprep.subr.mxu0 0.0
      %1380 = vmatpush1.msra.mxu0 0.0
      %1381 = vmatprep.subr.mxu0 0.0
      %1382 = vmatpush1.msra.mxu0 0.0
      %1383 = vmatprep.subr.mxu0 0.0
      %1384 = vmatpush1.msra.mxu0 0.0
      %1385 = vmatprep.subr.mxu0 0.0
      %1386 = vmatpush1.msra.mxu0 0.0
      %1387 = vmatprep.subr.mxu0 0.0
      %1388 = vmatpush1.msra.mxu0 0.0
      %1389 = vmatprep.mubr.f32.mxu0 0.0
      %1390 = vmatmul.mubr.f32.gmra.mrb[0].mxu0 %v1311
      %v1391 = vpop.f32.mrb[0].mxu0
      %v1392 = vadd.f32 %v1278, %v1391
      %v1393 = vpop.f32.mrb[0].mxu0
      %1394 = vmatprep.mubr.f32.mxu0 0.0
      %1395 = vmatmul.mubr.f32.gmra.mrb[0].mxu0 %v1313
      %v1396 = vpop.f32.mrb[0].mxu0
      %v1397 = vadd.f32 %v1283, %v1396
      %v1398 = vpop.f32.mrb[0].mxu0
      %1399 = vmatprep.mubr.f32.mxu0 0.0
      %1400 = vmatmul.mubr.f32.gmra.mrb[0].mxu0 %v1315
      %v1401 = vpop.f32.mrb[0].mxu0
      %v1402 = vadd.f32 %v1288, %v1401
      %v1403 = vpop.f32.mrb[0].mxu0
      %1404 = vmatprep.mubr.f32.mxu0 0.0
      %1405 = vmatmul.mubr.f32.gmra.mrb[0].mxu0 %v1317
      %v1406 = vpop.f32.mrb[0].mxu0
      %v1407 = vadd.f32 %v1293, %v1406
      %v1408 = vpop.f32.mrb[0].mxu0
      %1409 = vmatprep.mubr.f32.mxu0 0.0
      %1410 = vmatmul.mubr.f32.gmra.mrb[0].mxu0 %v1319
      %v1411 = vpop.f32.mrb[0].mxu0
      %v1412 = vadd.f32 %v1298, %v1411
      %v1413 = vpop.f32.mrb[0].mxu0
      %1414 = vmatprep.mubr.f32.mxu0 0.0
      %1415 = vmatmul.mubr.f32.gmra.mrb[0].mxu0 %v1321
      %v1416 = vpop.f32.mrb[0].mxu0
      %v1417 = vadd.f32 %v1303, %v1416
      %v1418 = vpop.f32.mrb[0].mxu0
      %1419 = vmatprep.mubr.f32.mxu0 0.0
      %1420 = vmatmul.mubr.f32.gmra.mrb[0].mxu0 %v1323
      %v1421 = vpop.f32.mrb[0].mxu0
      %v1422 = vadd.f32 %v1308, %v1421
      %v1423 = vpop.f32.mrb[0].mxu0
      %1424 = vdwg.mxu0
      %v1425 = vadd.f32 %v981, %v1392
      %v1426 = vadd.f32 %v982, %v1397
      %v1427 = vadd.f32 %v983, %v1402
      %v1428 = vadd.f32 %v984, %v1407
      %v1429 = vadd.f32 %v985, %v1412
      %v1430 = vadd.f32 %v986, %v1417
      %v1431 = vadd.f32 %v987, %v1422
      %1432 = vst.msk [vmem:[%s343] sm:$0xff] %vm550, %v1425
      %1433 = vst.msk [vmem:[%s343 + $0x8] sm:$0xff] %vm550, %v1426
      %1434 = vst.msk [vmem:[%s343 + $0x10] sm:$0xff] %vm550, %v1427
      %1435 = vst.msk [vmem:[%s343 + $0x18] sm:$0xff] %vm550, %v1428
      %1436 = vst.msk [vmem:[%s343 + $0x20] sm:$0xff] %vm550, %v1429
      %1437 = vst.msk [vmem:[%s343 + $0x28] sm:$0xff] %vm550, %v1430
      %1438 = vst.msk [vmem:[%s343 + $0x30] sm:$0xff] %vm550, %v1431
      %v1439 = vadd.f32 %v988, %v1144
      %s1440 = scalar_lea.vmem %s343, 56
      %1441 = vst.msk [vmem:[%s1440] sm:$0xff] %vm550, %v1439
      %s1442 = smul.u32 8, %s21
      %p1443 = scmp.lt.s32.totalorder %s20, 1
      %s1444 = scalar_select %p1443, %s20, 1
      %p1445 = scmp.lt.s32.totalorder %s1442, 7
      %s1446 = scalar_select %p1445, %s1442, 7
      %s1447 = smul.addr %s1444, 8
      %s1448 = sadd.s32 %s1446, %s1447
      %s1449 = smul.addr %s1448, 8
      %s1450 = scalar_lea.vmem %s5, %s1449
      // Predicated region
      $region41: #{tpu_custom_call.1} parent=39 // pred_check
        %p1451 = pneg %p171
      $region42: #{tpu_custom_call.1} parent=39 // pred_check_branch
        %1453 = sbr.rel (%p1451) target = $region44
      $region43: #{tpu_custom_call.1} parent=39 // pred_region
        %s1454 = smul.u32 8, %s21
      $region44: #{tpu_custom_call.1} parent=39 // pred_fallthru
        _
    $region40: #{tpu_custom_call.1} parent=5 // pred_fallthru
      _
    %p1455 = scmp.le.s32.totalorder 2, %s11
    // Predicated region
    $region45: #{tpu_custom_call.1} parent=5 // pred_check
      %p1456 = pneg %p1455
    $region46: #{tpu_custom_call.1} parent=5 // pred_check_branch
      %1458 = sbr.rel (%p1456) target = $region48
    $region47: #{tpu_custom_call.1} parent=5 // pred_region
      %s1459 = ssub.s32 %s11, 2
      // Predicated region
      $region49: #{tpu_custom_call.1} parent=47 // pred_check
        %p1460 = pneg %p177
      $region50: #{tpu_custom_call.1} parent=47 // pred_check_branch
        %1462 = sbr.rel (%p1460) target = $region52
      $region51: #{tpu_custom_call.1} parent=47 // pred_region
        %s1463 = smul.u32 8, %s23
        %p1464 = scmp.lt.s32.totalorder %s22, 1
        %s1465 = scalar_select %p1464, %s22, 1
        %p1466 = scmp.lt.s32.totalorder %s1463, 7
        %s1467 = scalar_select %p1466, %s1463, 7
        %s1468 = smul.addr %s1465, 8
        %s1469 = sadd.s32 %s1467, %s1468
        %s1470 = smul.addr %s1469, 8
        %s1471 = scalar_lea.vmem %s5, %s1470
      $region52: #{tpu_custom_call.1} parent=47 // pred_fallthru
        _
    $region48: #{tpu_custom_call.1} parent=5 // pred_fallthru
      _
  $region6: #{tpu_custom_call.1} parent=0 // loop_footer
    %s15 = sadd.s32 1, %s11
  $region7: #{tpu_custom_call.1} parent=0 // loop_footer_branch
    %10 = sbr.rel target = $region3
  $region8: #{tpu_custom_call.1} parent=0 // loop_exit
    _

</llo_original>
